<compile_context>
chip_gen: v7x
topology: tpu7x:2x2x1
jax: 0.10.0
libtpu: 0.0.40
codegen_flags: <defaults>
</compile_context>

<pallas_src>
import jax
import jax.numpy as jnp
import numpy as np
from jax import lax
from jax.experimental import pallas as pl
from jax.experimental.pallas import tpu as pltpu


def _round_up(x, m):
    return ((x + m - 1) // m) * m


def _make_kernel(num_heads, head_dim, compute_dtype):
    embed = num_heads * head_dim
    inv_heads = 1.0 / float(num_heads)

    def kernel(dec_ref, enc_ref, bias_ref,
               wq_ref, bq_ref, wkv_ref, bkv_ref, wo_ref, bo_ref,
               out_ref, attn_ref,
               kv_ref, ctx_ref):
        qi = pl.program_id(1)

        # --- K/V projection: once per batch element, persisted in VMEM -----
        @pl.when(qi == 0)
        def _():
            enc = enc_ref[0]                                        # (Dk, E)
            kv = (jnp.dot(enc, wkv_ref[...],
                          preferred_element_type=jnp.float32)
                  + bkv_ref[...])                                   # (Dk, 2E)
            kv_ref[...] = kv.astype(compute_dtype)

        dec = dec_ref[0]                                            # (tq, E)
        bias = bias_ref[0]                                          # (1, Dk)

        tq = dec.shape[0]
        dk = bias.shape[-1]

        # Q projection (1/sqrt(head_dim) pre-folded into Wq/bq).
        q = (jnp.dot(dec, wq_ref[...], preferred_element_type=jnp.float32)
             + bq_ref[...]).astype(compute_dtype)                   # (tq, E)

        attn_acc = jnp.zeros((tq, dk), jnp.float32)

        # Statically-unrolled head loop: scores + softmax + context per head,
        # context written into its column slice of the (tq, E) ctx buffer.
        # TODO(synk): for head_dim < 128 these lane-axis slices are not
        # 128-aligned; processing aligned 128-lane head groups would avoid the
        # sub-vreg shifts (irrelevant at these shapes).
        for h in range(num_heads):
            lo = h * head_dim
            q_h = q[:, lo:lo + head_dim]                            # (tq, hd)
            k_h = kv_ref[:, lo:lo + head_dim]                       # (Dk, hd)
            v_h = kv_ref[:, embed + lo:embed + lo + head_dim]       # (Dk, hd)

            # Scores (tq, Dk); already scaled via Wq.
            s = lax.dot_general(q_h, k_h, (((1,), (1,)), ((), ())),
                                preferred_element_type=jnp.float32)
            s = s + bias                                            # add mask

            # Softmax over encoder positions (f32; reciprocal on the EUP).
            m = jnp.max(s, axis=-1, keepdims=True)
            e = jnp.exp(s - m)
            denom = jnp.sum(e, axis=-1, keepdims=True)
            w = e * pl.reciprocal(denom, approx=True)               # (tq, Dk)
            # TODO(synk): attention dropout (train mode) is identity here.

            ctx_h = jnp.dot(w.astype(compute_dtype), v_h,
                            preferred_element_type=jnp.float32)     # (tq, hd)
            ctx_ref[:, lo:lo + head_dim] = ctx_h.astype(compute_dtype)
            attn_acc = attn_acc + w

        # Single K=E output projection (full MXU contraction) + bias.
        out = (jnp.dot(ctx_ref[...], wo_ref[...],
                       preferred_element_type=jnp.float32) + bo_ref[...])
        out_ref[0] = out.astype(out_ref.dtype)
        attn_ref[0] = (attn_acc * inv_heads).astype(attn_ref.dtype)

    return kernel


def encoder_decoder_attention(decoder_states, encoder_output, encoder_mask,
                              params, num_heads,
                              compute_dtype=jnp.bfloat16,
                              attn_dtype=jnp.float32,
                              tq=None,
                              vmem_limit_bytes=48 * 1024 * 1024):
    """decoder_states: (B, Dq, E); encoder_output: (B, Dk, E);
    encoder_mask: (B, Dk) int (1 = keep, 0 = pad) or None.
    Weights are (in, out) so y = x @ W + b; biases are (1, E)."""
    B, Dq, E = decoder_states.shape
    _, Dk, _ = encoder_output.shape
    assert E % num_heads == 0
    head_dim = E // num_heads
    inv_scale = 1.0 / float(np.sqrt(head_dim))

    wq, bq, wk, bk, wv, bv, wo, bo = params

    # Fold 1/sqrt(head_dim) into the Q projection; fuse K and V weights.
    wq_s = (wq * inv_scale).astype(compute_dtype)
    bq_s = (bq * inv_scale).astype(jnp.float32)
    wkv = jnp.concatenate([wk, wv], axis=1).astype(compute_dtype)    # (E, 2E)
    bkv = jnp.concatenate([bk, bv], axis=1).astype(jnp.float32)      # (1, 2E)
    wo_c = wo.astype(compute_dtype)
    bo_c = bo.astype(jnp.float32)

    # Query-tile size: multiple of 8, capped at 128 by default.
    # (On v6e, passing tq=256 amortizes per-step overhead better.)
    if tq is None:
        tq = min(128, _round_up(Dq, 8))
    tq = _round_up(tq, 8)
    Dq_pad = _round_up(Dq, tq)
    Dk_pad = _round_up(Dk, 128)          # lane-dense attn writeback

    dec = decoder_states.astype(compute_dtype)
    if Dq_pad != Dq:
        dec = jnp.pad(dec, ((0, 0), (0, Dq_pad - Dq), (0, 0)))
    enc = encoder_output.astype(compute_dtype)
    if Dk_pad != Dk:
        enc = jnp.pad(enc, ((0, 0), (0, Dk_pad - Dk), (0, 0)))

    # Additive mask bias: 0 where valid, -1e9 where masked or Dk-padding.
    valid = (jnp.arange(Dk_pad) < Dk)[None, :]                       # (1, Dkp)
    if encoder_mask is not None:
        em = jnp.pad(encoder_mask.astype(jnp.int32),
                     ((0, 0), (0, Dk_pad - Dk)))
        keep = valid & (em != 0)
    else:
        keep = jnp.broadcast_to(valid, (B, Dk_pad))
    bias = jnp.where(keep, jnp.float32(0.0),
                     jnp.float32(-1e9)).astype(jnp.float32)[:, None, :]

    num_q_tiles = Dq_pad // tq
    kernel = _make_kernel(num_heads, head_dim, compute_dtype)

    def build_call(single_buffer_weights):
        def const_spec(shape):
            # Constant index map -> the block is never re-fetched; a single
            # VMEM buffer suffices.
            if single_buffer_weights:
                return pl.BlockSpec(shape, lambda b, qi: (0, 0),
                                    pipeline_mode=pl.Buffered(1))
            return pl.BlockSpec(shape, lambda b, qi: (0, 0))

        return pl.pallas_call(
            kernel,
            out_shape=(
                jax.ShapeDtypeStruct((B, Dq_pad, E), decoder_states.dtype),
                jax.ShapeDtypeStruct((B, Dq_pad, Dk_pad), attn_dtype),
            ),
            grid_spec=pltpu.PrefetchScalarGridSpec(
                num_scalar_prefetch=0,
                grid=(B, num_q_tiles),
                in_specs=[
                    pl.BlockSpec((1, tq, E), lambda b, qi: (b, qi, 0)),      # dec
                    pl.BlockSpec((1, Dk_pad, E), lambda b, qi: (b, 0, 0)),   # enc
                    pl.BlockSpec((1, 1, Dk_pad), lambda b, qi: (b, 0, 0)),   # bias
                    const_spec((E, E)), const_spec((1, E)),                  # Wq,bq
                    const_spec((E, 2 * E)), const_spec((1, 2 * E)),          # Wkv,bkv
                    const_spec((E, E)), const_spec((1, E)),                  # Wo,bo
                ],
                out_specs=[
                    pl.BlockSpec((1, tq, E), lambda b, qi: (b, qi, 0)),
                    pl.BlockSpec((1, tq, Dk_pad), lambda b, qi: (b, qi, 0)),
                ],
                scratch_shapes=[
                    pltpu.VMEM((Dk_pad, 2 * E), compute_dtype),  # persistent KV
                    pltpu.VMEM((tq, E), compute_dtype),          # merged context
                ],
            ),
            compiler_params=pltpu.CompilerParams(
                dimension_semantics=("parallel", "arbitrary"),
                vmem_limit_bytes=vmem_limit_bytes),
        )

    args = (dec, enc, bias, wq_s, bq_s, wkv, bkv, wo_c, bo_c)
    try:
        out_p, attn_p = build_call(True)(*args)
    except Exception:
        # Fallback for JAX builds without BlockSpec pipeline_mode support.
        out_p, attn_p = build_call(False)(*args)

    return out_p[:, :Dq, :], attn_p[:, :Dq, :Dk]


def reference(decoder_states, encoder_output, encoder_mask, params, num_heads):
    """Pure-JAX fp32 reference mirroring the PyTorch forward (eval mode)."""
    wq, bq, wk, bk, wv, bv, wo, bo = params
    B, Dq, E = decoder_states.shape
    Dk = encoder_output.shape[1]
    hd = E // num_heads
    Q = decoder_states @ wq + bq
    K = encoder_output @ wk + bk
    V = encoder_output @ wv + bv
    Q = Q.reshape(B, Dq, num_heads, hd).transpose(0, 2, 1, 3)
    K = K.reshape(B, Dk, num_heads, hd).transpose(0, 2, 1, 3)
    V = V.reshape(B, Dk, num_heads, hd).transpose(0, 2, 1, 3)
    scores = jnp.einsum('bhqd,bhkd->bhqk', Q, K) / jnp.sqrt(jnp.float32(hd))
    if encoder_mask is not None:
        mask = encoder_mask[:, None, None, :]
        scores = jnp.where(mask == 0, -1e9, scores)
    w = jax.nn.softmax(scores, axis=-1)
    ctx = jnp.einsum('bhqk,bhkd->bhqd', w, V)
    ctx = ctx.transpose(0, 2, 1, 3).reshape(B, Dq, E)
    out = ctx @ wo + bo
    return out, w.mean(axis=1)


if __name__ == "__main__":
    # Small shapes consistent with the module's forward signature.
    B, DEC_SEQ, ENC_SEQ, EMBED, HEADS = 2, 8, 16, 32, 2

    key = jax.random.PRNGKey(0)
    keys = jax.random.split(key, 8)

    decoder_states = jax.random.normal(keys[0], (B, DEC_SEQ, EMBED), jnp.float32)
    encoder_output = jax.random.normal(keys[1], (B, ENC_SEQ, EMBED), jnp.float32)
    # Encoder padding mask: last 3 positions of batch element 1 are padding.
    encoder_mask = jnp.ones((B, ENC_SEQ), jnp.int32)
    encoder_mask = encoder_mask.at[1, ENC_SEQ - 3:].set(0)

    def init_linear(k, fan_in, fan_out):
        # Deterministic init; weights stored as (in, out) so y = x @ W + b.
        w = jax.random.normal(k, (fan_in, fan_out), jnp.float32) * 0.05
        b = jnp.zeros((1, fan_out), jnp.float32)
        return w, b

    wq, bq = init_linear(keys[2], EMBED, EMBED)
    wk, bk = init_linear(keys[3], EMBED, EMBED)
    wv, bv = init_linear(keys[4], EMBED, EMBED)
    wo, bo = init_linear(keys[5], EMBED, EMBED)
    params = (wq, bq, wk, bk, wv, bv, wo, bo)

    out, attn = encoder_decoder_attention(
        decoder_states, encoder_output, encoder_mask, params, HEADS)
    jax.block_until_ready((out, attn))

    out_ref, attn_ref = reference(
        decoder_states, encoder_output, encoder_mask, params, HEADS)

    # bf16 MXU operands (f32 accumulation) + approx reciprocal: loosened
    # tolerances against the fp32 reference.
    np.testing.assert_allclose(np.asarray(out), np.asarray(out_ref),
                               rtol=2e-2, atol=2e-2)
    np.testing.assert_allclose(np.asarray(attn), np.asarray(attn_ref),
                               rtol=2e-2, atol=2e-2)
    # Attention rows sum to ~1 (approx reciprocal in the softmax denominator).
    np.testing.assert_allclose(np.asarray(attn).sum(-1),
                               np.ones((B, DEC_SEQ)), rtol=5e-3, atol=5e-3)

    print("KERNEL_OK")
</pallas_src>

<mosaic_0001>
module attributes {stable_mosaic.version = 11 : i64} {
  func.func @kernel(%arg0: i32, %arg1: i32, %arg2: memref<1x8x32xbf16, #tpu.memory_space<vmem>>, %arg3: memref<1x128x32xbf16, #tpu.memory_space<vmem>>, %arg4: memref<1x1x128xf32, #tpu.memory_space<vmem>>, %arg5: memref<32x32xbf16, #tpu.memory_space<vmem>>, %arg6: memref<1x32xf32, #tpu.memory_space<vmem>>, %arg7: memref<32x64xbf16, #tpu.memory_space<vmem>>, %arg8: memref<1x64xf32, #tpu.memory_space<vmem>>, %arg9: memref<32x32xbf16, #tpu.memory_space<vmem>>, %arg10: memref<1x32xf32, #tpu.memory_space<vmem>>, %arg11: memref<1x8x32xf32, #tpu.memory_space<vmem>>, %arg12: memref<1x8x128xf32, #tpu.memory_space<vmem>>, %arg13: memref<128x64xbf16, #tpu.memory_space<vmem>>, %arg14: memref<8x32xbf16, #tpu.memory_space<vmem>>) attributes {dimension_semantics = [#tpu.dimension_semantics<parallel>, #tpu.dimension_semantics<arbitrary>], iteration_bounds = array<i64: 2, 1>, scalar_prefetch = 0 : i64, scratch_operands = 2 : i64, tpu.core_type = #tpu.core_type<tc>, window_params = [{transform_indices = @transform_0, window_bounds = array<i64: 1, 8, 32>}, {transform_indices = @transform_1, window_bounds = array<i64: 1, 128, 32>}, {transform_indices = @transform_2, window_bounds = array<i64: 1, 1, 128>}, {pipeline_mode = #tpu.pipeline_mode<synchronous>, transform_indices = @transform_3, window_bounds = array<i64: 32, 32>}, {pipeline_mode = #tpu.pipeline_mode<synchronous>, transform_indices = @transform_4, window_bounds = array<i64: 1, 32>}, {pipeline_mode = #tpu.pipeline_mode<synchronous>, transform_indices = @transform_5, window_bounds = array<i64: 32, 64>}, {pipeline_mode = #tpu.pipeline_mode<synchronous>, transform_indices = @transform_6, window_bounds = array<i64: 1, 64>}, {pipeline_mode = #tpu.pipeline_mode<synchronous>, transform_indices = @transform_7, window_bounds = array<i64: 32, 32>}, {pipeline_mode = #tpu.pipeline_mode<synchronous>, transform_indices = @transform_8, window_bounds = array<i64: 1, 32>}, {transform_indices = @transform_9, window_bounds = array<i64: 1, 8, 32>}, {transform_indices = @transform_10, window_bounds = array<i64: 1, 8, 128>}]} {
    %c0_i32 = arith.constant 0 : i32
    %0 = arith.cmpi eq, %arg1, %c0_i32 : i32
    %1 = arith.extui %0 : i1 to i32
    %c0_i32_0 = arith.constant 0 : i32
    %2 = arith.cmpi ne, %1, %c0_i32_0 : i32
    scf.if %2 {
      %c0_42 = arith.constant 0 : index
      %c0_43 = arith.constant 0 : index
      %c0_44 = arith.constant 0 : index
      %70 = vector.load %arg3[%c0_42, %c0_43, %c0_44] : memref<1x128x32xbf16, #tpu.memory_space<vmem>>, vector<1x128x32xbf16>
      %71 = vector.shape_cast %70 : vector<1x128x32xbf16> to vector<128x32xbf16>
      %c0_45 = arith.constant 0 : index
      %c0_46 = arith.constant 0 : index
      %72 = vector.load %arg7[%c0_45, %c0_46] : memref<32x64xbf16, #tpu.memory_space<vmem>>, vector<32x64xbf16>
      %cst_47 = arith.constant dense<0.000000e+00> : vector<128x64xf32>
      %73 = tpu.matmul %71, %72, %cst_47 {dimension_numbers = #tpu.dot_dimension_numbers<[1], [0], [0], [1], [0, 0, 1, 1], [], []>} : vector<128x32xbf16>, vector<32x64xbf16>, vector<128x64xf32> -> vector<128x64xf32>
      %c0_48 = arith.constant 0 : index
      %c0_49 = arith.constant 0 : index
      %74 = vector.load %arg8[%c0_48, %c0_49] : memref<1x64xf32, #tpu.memory_space<vmem>>, vector<1x64xf32>
      %75 = vector.broadcast %74 : vector<1x64xf32> to vector<128x64xf32>
      %76 = arith.addf %73, %75 : vector<128x64xf32>
      %77 = arith.truncf %76 : vector<128x64xf32> to vector<128x64xbf16>
      %c0_50 = arith.constant 0 : index
      %c0_51 = arith.constant 0 : index
      %78 = vector.load %arg13[%c0_50, %c0_51] : memref<128x64xbf16, #tpu.memory_space<vmem>>, vector<128x64xbf16>
      tpu.vector_store %arg13[%c0_50, %c0_51], %77 {strides = array<i32>} : memref<128x64xbf16, #tpu.memory_space<vmem>>, vector<128x64xbf16>,
    } else {
    }
    %c0 = arith.constant 0 : index
    %c0_1 = arith.constant 0 : index
    %c0_2 = arith.constant 0 : index
    %3 = vector.load %arg2[%c0, %c0_1, %c0_2] : memref<1x8x32xbf16, #tpu.memory_space<vmem>>, vector<1x8x32xbf16>
    %4 = vector.shape_cast %3 : vector<1x8x32xbf16> to vector<8x32xbf16>
    %c0_3 = arith.constant 0 : index
    %c0_4 = arith.constant 0 : index
    %c0_5 = arith.constant 0 : index
    %5 = vector.load %arg4[%c0_3, %c0_4, %c0_5] : memref<1x1x128xf32, #tpu.memory_space<vmem>>, vector<1x1x128xf32>
    %6 = vector.shape_cast %5 : vector<1x1x128xf32> to vector<1x128xf32>
    %c0_6 = arith.constant 0 : index
    %c0_7 = arith.constant 0 : index
    %7 = vector.load %arg5[%c0_6, %c0_7] : memref<32x32xbf16, #tpu.memory_space<vmem>>, vector<32x32xbf16>
    %cst = arith.constant dense<0.000000e+00> : vector<8x32xf32>
    %8 = tpu.matmul %4, %7, %cst {dimension_numbers = #tpu.dot_dimension_numbers<[1], [0], [0], [1], [0, 0, 1, 1], [], []>} : vector<8x32xbf16>, vector<32x32xbf16>, vector<8x32xf32> -> vector<8x32xf32>
    %c0_8 = arith.constant 0 : index
    %c0_9 = arith.constant 0 : index
    %9 = vector.load %arg6[%c0_8, %c0_9] : memref<1x32xf32, #tpu.memory_space<vmem>>, vector<1x32xf32>
    %10 = vector.broadcast %9 : vector<1x32xf32> to vector<8x32xf32>
    %11 = arith.addf %8, %10 : vector<8x32xf32>
    %12 = arith.truncf %11 : vector<8x32xf32> to vector<8x32xbf16>
    %cst_10 = arith.constant 0.000000e+00 : f32
    %13 = vector.broadcast %cst_10 : f32 to vector<8x128xf32>
    %14 = vector.extract_strided_slice %12 {offsets = [0, 0], sizes = [8, 16], strides = [1, 1]} : vector<8x32xbf16> to vector<8x16xbf16>
    %c0_11 = arith.constant 0 : index
    %c0_12 = arith.constant 0 : index
    %15 = vector.load %arg13[%c0_11, %c0_12] : memref<128x64xbf16, #tpu.memory_space<vmem>>, vector<128x16xbf16>
    %c0_13 = arith.constant 0 : index
    %c32 = arith.constant 32 : index
    %16 = vector.load %arg13[%c0_13, %c32] : memref<128x64xbf16, #tpu.memory_space<vmem>>, vector<128x16xbf16>
    %cst_14 = arith.constant dense<0.000000e+00> : vector<8x128xf32>
    %17 = tpu.matmul %14, %15, %cst_14 {dimension_numbers = #tpu.dot_dimension_numbers<[1], [1], [0], [0], [0, 0, 1, 0], [], []>} : vector<8x16xbf16>, vector<128x16xbf16>, vector<8x128xf32> -> vector<8x128xf32>
    %18 = vector.broadcast %6 : vector<1x128xf32> to vector<8x128xf32>
    %19 = arith.addf %17, %18 : vector<8x128xf32>
    %cst_15 = arith.constant dense<0xFF800000> : vector<8xf32>
    %20 = vector.multi_reduction <maximumf>, %19, %cst_15 [1] : vector<8x128xf32> to vector<8xf32>
    %21 = vector.shape_cast %20 : vector<8xf32> to vector<8x1xf32>
    %22 = vector.broadcast %21 : vector<8x1xf32> to vector<8x128xf32>
    %23 = arith.subf %19, %22 : vector<8x128xf32>
    %24 = math.exp %23 : vector<8x128xf32>
    %cst_16 = arith.constant dense<0.000000e+00> : vector<8xf32>
    %25 = vector.multi_reduction <add>, %24, %cst_16 [1] : vector<8x128xf32> to vector<8xf32>
    %26 = vector.shape_cast %25 : vector<8xf32> to vector<8x1xf32>
    %27 = tpu.reciprocal %26 {approx = true} : vector<8x1xf32> -> vector<8x1xf32>
    %28 = vector.broadcast %27 : vector<8x1xf32> to vector<8x128xf32>
    %29 = arith.mulf %24, %28 : vector<8x128xf32>
    %30 = arith.truncf %29 : vector<8x128xf32> to vector<8x128xbf16>
    %cst_17 = arith.constant dense<0.000000e+00> : vector<8x16xf32>
    %31 = tpu.matmul %30, %16, %cst_17 {dimension_numbers = #tpu.dot_dimension_numbers<[1], [0], [0], [1], [0, 0, 1, 1], [], []>} : vector<8x128xbf16>, vector<128x16xbf16>, vector<8x16xf32> -> vector<8x16xf32>
    %32 = arith.truncf %31 : vector<8x16xf32> to vector<8x16xbf16>
    %c0_18 = arith.constant 0 : index
    %c0_19 = arith.constant 0 : index
    %33 = vector.load %arg14[%c0_18, %c0_19] : memref<8x32xbf16, #tpu.memory_space<vmem>>, vector<8x16xbf16>
    tpu.vector_store %arg14[%c0_18, %c0_19], %32 {strides = array<i32>} : memref<8x32xbf16, #tpu.memory_space<vmem>>, vector<8x16xbf16>,
    %34 = arith.addf %13, %29 : vector<8x128xf32>
    %35 = vector.extract_strided_slice %12 {offsets = [0, 16], sizes = [8, 16], strides = [1, 1]} : vector<8x32xbf16> to vector<8x16xbf16>
    %c0_20 = arith.constant 0 : index
    %c16 = arith.constant 16 : index
    %36 = vector.load %arg13[%c0_20, %c16] : memref<128x64xbf16, #tpu.memory_space<vmem>>, vector<128x16xbf16>
    %c0_21 = arith.constant 0 : index
    %c48 = arith.constant 48 : index
    %37 = vector.load %arg13[%c0_21, %c48] : memref<128x64xbf16, #tpu.memory_space<vmem>>, vector<128x16xbf16>
    %cst_22 = arith.constant dense<0.000000e+00> : vector<8x128xf32>
    %38 = tpu.matmul %35, %36, %cst_22 {dimension_numbers = #tpu.dot_dimension_numbers<[1], [1], [0], [0], [0, 0, 1, 0], [], []>} : vector<8x16xbf16>, vector<128x16xbf16>, vector<8x128xf32> -> vector<8x128xf32>
    %39 = vector.broadcast %6 : vector<1x128xf32> to vector<8x128xf32>
    %40 = arith.addf %38, %39 : vector<8x128xf32>
    %cst_23 = arith.constant dense<0xFF800000> : vector<8xf32>
    %41 = vector.multi_reduction <maximumf>, %40, %cst_23 [1] : vector<8x128xf32> to vector<8xf32>
    %42 = vector.shape_cast %41 : vector<8xf32> to vector<8x1xf32>
    %43 = vector.broadcast %42 : vector<8x1xf32> to vector<8x128xf32>
    %44 = arith.subf %40, %43 : vector<8x128xf32>
    %45 = math.exp %44 : vector<8x128xf32>
    %cst_24 = arith.constant dense<0.000000e+00> : vector<8xf32>
    %46 = vector.multi_reduction <add>, %45, %cst_24 [1] : vector<8x128xf32> to vector<8xf32>
    %47 = vector.shape_cast %46 : vector<8xf32> to vector<8x1xf32>
    %48 = tpu.reciprocal %47 {approx = true} : vector<8x1xf32> -> vector<8x1xf32>
    %49 = vector.broadcast %48 : vector<8x1xf32> to vector<8x128xf32>
    %50 = arith.mulf %45, %49 : vector<8x128xf32>
    %51 = arith.truncf %50 : vector<8x128xf32> to vector<8x128xbf16>
    %cst_25 = arith.constant dense<0.000000e+00> : vector<8x16xf32>
    %52 = tpu.matmul %51, %37, %cst_25 {dimension_numbers = #tpu.dot_dimension_numbers<[1], [0], [0], [1], [0, 0, 1, 1], [], []>} : vector<8x128xbf16>, vector<128x16xbf16>, vector<8x16xf32> -> vector<8x16xf32>
    %53 = arith.truncf %52 : vector<8x16xf32> to vector<8x16xbf16>
    %c0_26 = arith.constant 0 : index
    %c16_27 = arith.constant 16 : index
    %54 = vector.load %arg14[%c0_26, %c16_27] : memref<8x32xbf16, #tpu.memory_space<vmem>>, vector<8x16xbf16>
    tpu.vector_store %arg14[%c0_26, %c16_27], %53 {strides = array<i32>} : memref<8x32xbf16, #tpu.memory_space<vmem>>, vector<8x16xbf16>,
    %55 = arith.addf %34, %50 : vector<8x128xf32>
    %c0_28 = arith.constant 0 : index
    %c0_29 = arith.constant 0 : index
    %56 = vector.load %arg14[%c0_28, %c0_29] : memref<8x32xbf16, #tpu.memory_space<vmem>>, vector<8x32xbf16>
    %c0_30 = arith.constant 0 : index
    %c0_31 = arith.constant 0 : index
    %57 = vector.load %arg9[%c0_30, %c0_31] : memref<32x32xbf16, #tpu.memory_space<vmem>>, vector<32x32xbf16>
    %cst_32 = arith.constant dense<0.000000e+00> : vector<8x32xf32>
    %58 = tpu.matmul %56, %57, %cst_32 {dimension_numbers = #tpu.dot_dimension_numbers<[1], [0], [0], [1], [0, 0, 1, 1], [], []>} : vector<8x32xbf16>, vector<32x32xbf16>, vector<8x32xf32> -> vector<8x32xf32>
    %c0_33 = arith.constant 0 : index
    %c0_34 = arith.constant 0 : index
    %59 = vector.load %arg10[%c0_33, %c0_34] : memref<1x32xf32, #tpu.memory_space<vmem>>, vector<1x32xf32>
    %60 = vector.broadcast %59 : vector<1x32xf32> to vector<8x32xf32>
    %61 = arith.addf %58, %60 : vector<8x32xf32>
    %c0_35 = arith.constant 0 : index
    %c0_36 = arith.constant 0 : index
    %c0_37 = arith.constant 0 : index
    %62 = vector.load %arg11[%c0_35, %c0_36, %c0_37] : memref<1x8x32xf32, #tpu.memory_space<vmem>>, vector<1x8x32xf32>
    %63 = vector.shape_cast %62 : vector<1x8x32xf32> to vector<8x32xf32>
    %64 = vector.shape_cast %61 : vector<8x32xf32> to vector<1x8x32xf32>
    tpu.vector_store %arg11[%c0_35, %c0_36, %c0_37], %64 {strides = array<i32>} : memref<1x8x32xf32, #tpu.memory_space<vmem>>, vector<1x8x32xf32>,
    %cst_38 = arith.constant 5.000000e-01 : f32
    %65 = vector.broadcast %cst_38 : f32 to vector<8x128xf32>
    %66 = arith.mulf %55, %65 : vector<8x128xf32>
    %c0_39 = arith.constant 0 : index
    %c0_40 = arith.constant 0 : index
    %c0_41 = arith.constant 0 : index
    %67 = vector.load %arg12[%c0_39, %c0_40, %c0_41] : memref<1x8x128xf32, #tpu.memory_space<vmem>>, vector<1x8x128xf32>
    %68 = vector.shape_cast %67 : vector<1x8x128xf32> to vector<8x128xf32>
    %69 = vector.shape_cast %66 : vector<8x128xf32> to vector<1x8x128xf32>
    tpu.vector_store %arg12[%c0_39, %c0_40, %c0_41], %69 {strides = array<i32>} : memref<1x8x128xf32, #tpu.memory_space<vmem>>, vector<1x8x128xf32>,
    return
  }
  func.func @transform_0(%arg0: i32, %arg1: i32) -> (i32, i32, i32) {
    %c0_i32 = arith.constant 0 : i32
    %c0_i32_0 = arith.constant 0 : i32
    return %arg0, %arg1, %c0_i32 : i32, i32, i32
  }
  func.func @transform_1(%arg0: i32, %arg1: i32) -> (i32, i32, i32) {
    %c0_i32 = arith.constant 0 : i32
    %c0_i32_0 = arith.constant 0 : i32
    %c0_i32_1 = arith.constant 0 : i32
    return %arg0, %c0_i32, %c0_i32_0 : i32, i32, i32
  }
  func.func @transform_2(%arg0: i32, %arg1: i32) -> (i32, i32, i32) {
    %c0_i32 = arith.constant 0 : i32
    %c0_i32_0 = arith.constant 0 : i32
    %c0_i32_1 = arith.constant 0 : i32
    return %arg0, %c0_i32, %c0_i32_0 : i32, i32, i32
  }
  func.func @transform_3(%arg0: i32, %arg1: i32) -> (i32, i32) {
    %c0_i32 = arith.constant 0 : i32
    %c0_i32_0 = arith.constant 0 : i32
    %c0_i32_1 = arith.constant 0 : i32
    return %c0_i32, %c0_i32_0 : i32, i32
  }
  func.func @transform_4(%arg0: i32, %arg1: i32) -> (i32, i32) {
    %c0_i32 = arith.constant 0 : i32
    %c0_i32_0 = arith.constant 0 : i32
    %c0_i32_1 = arith.constant 0 : i32
    return %c0_i32, %c0_i32_0 : i32, i32
  }
  func.func @transform_5(%arg0: i32, %arg1: i32) -> (i32, i32) {
    %c0_i32 = arith.constant 0 : i32
    %c0_i32_0 = arith.constant 0 : i32
    %c0_i32_1 = arith.constant 0 : i32
    return %c0_i32, %c0_i32_0 : i32, i32
  }
  func.func @transform_6(%arg0: i32, %arg1: i32) -> (i32, i32) {
    %c0_i32 = arith.constant 0 : i32
    %c0_i32_0 = arith.constant 0 : i32
    %c0_i32_1 = arith.constant 0 : i32
    return %c0_i32, %c0_i32_0 : i32, i32
  }
  func.func @transform_7(%arg0: i32, %arg1: i32) -> (i32, i32) {
    %c0_i32 = arith.constant 0 : i32
    %c0_i32_0 = arith.constant 0 : i32
    %c0_i32_1 = arith.constant 0 : i32
    return %c0_i32, %c0_i32_0 : i32, i32
  }
  func.func @transform_8(%arg0: i32, %arg1: i32) -> (i32, i32) {
    %c0_i32 = arith.constant 0 : i32
    %c0_i32_0 = arith.constant 0 : i32
    %c0_i32_1 = arith.constant 0 : i32
    return %c0_i32, %c0_i32_0 : i32, i32
  }
  func.func @transform_9(%arg0: i32, %arg1: i32) -> (i32, i32, i32) {
    %c0_i32 = arith.constant 0 : i32
    %c0_i32_0 = arith.constant 0 : i32
    return %arg0, %arg1, %c0_i32 : i32, i32, i32
  }
  func.func @transform_10(%arg0: i32, %arg1: i32) -> (i32, i32, i32) {
    %c0_i32 = arith.constant 0 : i32
    %c0_i32_0 = arith.constant 0 : i32
    return %arg0, %arg1, %c0_i32 : i32, i32, i32
  }
}

module attributes {stable_mosaic.version = 11 : i64} {
  func.func @kernel(%arg0: i32, %arg1: i32, %arg2: memref<1x8x32xbf16, #tpu.memory_space<vmem>>, %arg3: memref<1x128x32xbf16, #tpu.memory_space<vmem>>, %arg4: memref<1x1x128xf32, #tpu.memory_space<vmem>>, %arg5: memref<32x32xbf16, #tpu.memory_space<vmem>>, %arg6: memref<1x32xf32, #tpu.memory_space<vmem>>, %arg7: memref<32x64xbf16, #tpu.memory_space<vmem>>, %arg8: memref<1x64xf32, #tpu.memory_space<vmem>>, %arg9: memref<32x32xbf16, #tpu.memory_space<vmem>>, %arg10: memref<1x32xf32, #tpu.memory_space<vmem>>, %arg11: memref<1x8x32xf32, #tpu.memory_space<vmem>>, %arg12: memref<1x8x128xf32, #tpu.memory_space<vmem>>, %arg13: memref<128x64xbf16, #tpu.memory_space<vmem>>, %arg14: memref<8x32xbf16, #tpu.memory_space<vmem>>) attributes {dimension_semantics = [#tpu.dimension_semantics<parallel>, #tpu.dimension_semantics<arbitrary>], iteration_bounds = array<i64: 2, 1>, scalar_prefetch = 0 : i64, scratch_operands = 2 : i64, tpu.core_type = #tpu.core_type<tc>, window_params = [{transform_indices = @transform_0, window_bounds = array<i64: 1, 8, 32>}, {transform_indices = @transform_1, window_bounds = array<i64: 1, 128, 32>}, {transform_indices = @transform_2, window_bounds = array<i64: 1, 1, 128>}, {pipeline_mode = #tpu.pipeline_mode<synchronous>, transform_indices = @transform_3, window_bounds = array<i64: 32, 32>}, {pipeline_mode = #tpu.pipeline_mode<synchronous>, transform_indices = @transform_4, window_bounds = array<i64: 1, 32>}, {pipeline_mode = #tpu.pipeline_mode<synchronous>, transform_indices = @transform_5, window_bounds = array<i64: 32, 64>}, {pipeline_mode = #tpu.pipeline_mode<synchronous>, transform_indices = @transform_6, window_bounds = array<i64: 1, 64>}, {pipeline_mode = #tpu.pipeline_mode<synchronous>, transform_indices = @transform_7, window_bounds = array<i64: 32, 32>}, {pipeline_mode = #tpu.pipeline_mode<synchronous>, transform_indices = @transform_8, window_bounds = array<i64: 1, 32>}, {transform_indices = @transform_9, window_bounds = array<i64: 1, 8, 32>}, {transform_indices = @transform_10, window_bounds = array<i64: 1, 8, 128>}]} {
    %c0_i32 = arith.constant 0 : i32
    %0 = arith.cmpi eq, %arg1, %c0_i32 : i32
    %1 = arith.extui %0 : i1 to i32
    %c0_i32_0 = arith.constant 0 : i32
    %2 = arith.cmpi ne, %1, %c0_i32_0 : i32
    scf.if %2 {
      %c0_42 = arith.constant 0 : index
      %c0_43 = arith.constant 0 : index
      %c0_44 = arith.constant 0 : index
      %70 = vector.load %arg3[%c0_42, %c0_43, %c0_44] : memref<1x128x32xbf16, #tpu.memory_space<vmem>>, vector<1x128x32xbf16>
      %71 = vector.shape_cast %70 : vector<1x128x32xbf16> to vector<128x32xbf16>
      %c0_45 = arith.constant 0 : index
      %c0_46 = arith.constant 0 : index
      %72 = vector.load %arg7[%c0_45, %c0_46] : memref<32x64xbf16, #tpu.memory_space<vmem>>, vector<32x64xbf16>
      %cst_47 = arith.constant dense<0.000000e+00> : vector<128x64xf32>
      %73 = tpu.matmul %71, %72, %cst_47 {dimension_numbers = #tpu.dot_dimension_numbers<[1], [0], [0], [1], [0, 0, 1, 1], [], []>} : vector<128x32xbf16>, vector<32x64xbf16>, vector<128x64xf32> -> vector<128x64xf32>
      %c0_48 = arith.constant 0 : index
      %c0_49 = arith.constant 0 : index
      %74 = vector.load %arg8[%c0_48, %c0_49] : memref<1x64xf32, #tpu.memory_space<vmem>>, vector<1x64xf32>
      %75 = vector.broadcast %74 : vector<1x64xf32> to vector<128x64xf32>
      %76 = arith.addf %73, %75 : vector<128x64xf32>
      %77 = arith.truncf %76 : vector<128x64xf32> to vector<128x64xbf16>
      %c0_50 = arith.constant 0 : index
      %c0_51 = arith.constant 0 : index
      %78 = vector.load %arg13[%c0_50, %c0_51] : memref<128x64xbf16, #tpu.memory_space<vmem>>, vector<128x64xbf16>
      tpu.vector_store %arg13[%c0_50, %c0_51], %77 {strides = array<i32>} : memref<128x64xbf16, #tpu.memory_space<vmem>>, vector<128x64xbf16>,
    } else {
    }
    %c0 = arith.constant 0 : index
    %c0_1 = arith.constant 0 : index
    %c0_2 = arith.constant 0 : index
    %3 = vector.load %arg2[%c0, %c0_1, %c0_2] : memref<1x8x32xbf16, #tpu.memory_space<vmem>>, vector<1x8x32xbf16>
    %4 = vector.shape_cast %3 : vector<1x8x32xbf16> to vector<8x32xbf16>
    %c0_3 = arith.constant 0 : index
    %c0_4 = arith.constant 0 : index
    %c0_5 = arith.constant 0 : index
    %5 = vector.load %arg4[%c0_3, %c0_4, %c0_5] : memref<1x1x128xf32, #tpu.memory_space<vmem>>, vector<1x1x128xf32>
    %6 = vector.shape_cast %5 : vector<1x1x128xf32> to vector<1x128xf32>
    %c0_6 = arith.constant 0 : index
    %c0_7 = arith.constant 0 : index
    %7 = vector.load %arg5[%c0_6, %c0_7] : memref<32x32xbf16, #tpu.memory_space<vmem>>, vector<32x32xbf16>
    %cst = arith.constant dense<0.000000e+00> : vector<8x32xf32>
    %8 = tpu.matmul %4, %7, %cst {dimension_numbers = #tpu.dot_dimension_numbers<[1], [0], [0], [1], [0, 0, 1, 1], [], []>} : vector<8x32xbf16>, vector<32x32xbf16>, vector<8x32xf32> -> vector<8x32xf32>
    %c0_8 = arith.constant 0 : index
    %c0_9 = arith.constant 0 : index
    %9 = vector.load %arg6[%c0_8, %c0_9] : memref<1x32xf32, #tpu.memory_space<vmem>>, vector<1x32xf32>
    %10 = vector.broadcast %9 : vector<1x32xf32> to vector<8x32xf32>
    %11 = arith.addf %8, %10 : vector<8x32xf32>
    %12 = arith.truncf %11 : vector<8x32xf32> to vector<8x32xbf16>
    %cst_10 = arith.constant 0.000000e+00 : f32
    %13 = vector.broadcast %cst_10 : f32 to vector<8x128xf32>
    %14 = vector.extract_strided_slice %12 {offsets = [0, 0], sizes = [8, 16], strides = [1, 1]} : vector<8x32xbf16> to vector<8x16xbf16>
    %c0_11 = arith.constant 0 : index
    %c0_12 = arith.constant 0 : index
    %15 = vector.load %arg13[%c0_11, %c0_12] : memref<128x64xbf16, #tpu.memory_space<vmem>>, vector<128x16xbf16>
    %c0_13 = arith.constant 0 : index
    %c32 = arith.constant 32 : index
    %16 = vector.load %arg13[%c0_13, %c32] : memref<128x64xbf16, #tpu.memory_space<vmem>>, vector<128x16xbf16>
    %cst_14 = arith.constant dense<0.000000e+00> : vector<8x128xf32>
    %17 = tpu.matmul %14, %15, %cst_14 {dimension_numbers = #tpu.dot_dimension_numbers<[1], [1], [0], [0], [0, 0, 1, 0], [], []>} : vector<8x16xbf16>, vector<128x16xbf16>, vector<8x128xf32> -> vector<8x128xf32>
    %18 = vector.broadcast %6 : vector<1x128xf32> to vector<8x128xf32>
    %19 = arith.addf %17, %18 : vector<8x128xf32>
    %cst_15 = arith.constant dense<0xFF800000> : vector<8xf32>
    %20 = vector.multi_reduction <maximumf>, %19, %cst_15 [1] : vector<8x128xf32> to vector<8xf32>
    %21 = vector.shape_cast %20 : vector<8xf32> to vector<8x1xf32>
    %22 = vector.broadcast %21 : vector<8x1xf32> to vector<8x128xf32>
    %23 = arith.subf %19, %22 : vector<8x128xf32>
    %24 = math.exp %23 : vector<8x128xf32>
    %cst_16 = arith.constant dense<0.000000e+00> : vector<8xf32>
    %25 = vector.multi_reduction <add>, %24, %cst_16 [1] : vector<8x128xf32> to vector<8xf32>
    %26 = vector.shape_cast %25 : vector<8xf32> to vector<8x1xf32>
    %27 = tpu.reciprocal %26 {approx = true} : vector<8x1xf32> -> vector<8x1xf32>
    %28 = vector.broadcast %27 : vector<8x1xf32> to vector<8x128xf32>
    %29 = arith.mulf %24, %28 : vector<8x128xf32>
    %30 = arith.truncf %29 : vector<8x128xf32> to vector<8x128xbf16>
    %cst_17 = arith.constant dense<0.000000e+00> : vector<8x16xf32>
    %31 = tpu.matmul %30, %16, %cst_17 {dimension_numbers = #tpu.dot_dimension_numbers<[1], [0], [0], [1], [0, 0, 1, 1], [], []>} : vector<8x128xbf16>, vector<128x16xbf16>, vector<8x16xf32> -> vector<8x16xf32>
    %32 = arith.truncf %31 : vector<8x16xf32> to vector<8x16xbf16>
    %c0_18 = arith.constant 0 : index
    %c0_19 = arith.constant 0 : index
    %33 = vector.load %arg14[%c0_18, %c0_19] : memref<8x32xbf16, #tpu.memory_space<vmem>>, vector<8x16xbf16>
    tpu.vector_store %arg14[%c0_18, %c0_19], %32 {strides = array<i32>} : memref<8x32xbf16, #tpu.memory_space<vmem>>, vector<8x16xbf16>,
    %34 = arith.addf %13, %29 : vector<8x128xf32>
    %35 = vector.extract_strided_slice %12 {offsets = [0, 16], sizes = [8, 16], strides = [1, 1]} : vector<8x32xbf16> to vector<8x16xbf16>
    %c0_20 = arith.constant 0 : index
    %c16 = arith.constant 16 : index
    %36 = vector.load %arg13[%c0_20, %c16] : memref<128x64xbf16, #tpu.memory_space<vmem>>, vector<128x16xbf16>
    %c0_21 = arith.constant 0 : index
    %c48 = arith.constant 48 : index
    %37 = vector.load %arg13[%c0_21, %c48] : memref<128x64xbf16, #tpu.memory_space<vmem>>, vector<128x16xbf16>
    %cst_22 = arith.constant dense<0.000000e+00> : vector<8x128xf32>
    %38 = tpu.matmul %35, %36, %cst_22 {dimension_numbers = #tpu.dot_dimension_numbers<[1], [1], [0], [0], [0, 0, 1, 0], [], []>} : vector<8x16xbf16>, vector<128x16xbf16>, vector<8x128xf32> -> vector<8x128xf32>
    %39 = vector.broadcast %6 : vector<1x128xf32> to vector<8x128xf32>
    %40 = arith.addf %38, %39 : vector<8x128xf32>
    %cst_23 = arith.constant dense<0xFF800000> : vector<8xf32>
    %41 = vector.multi_reduction <maximumf>, %40, %cst_23 [1] : vector<8x128xf32> to vector<8xf32>
    %42 = vector.shape_cast %41 : vector<8xf32> to vector<8x1xf32>
    %43 = vector.broadcast %42 : vector<8x1xf32> to vector<8x128xf32>
    %44 = arith.subf %40, %43 : vector<8x128xf32>
    %45 = math.exp %44 : vector<8x128xf32>
    %cst_24 = arith.constant dense<0.000000e+00> : vector<8xf32>
    %46 = vector.multi_reduction <add>, %45, %cst_24 [1] : vector<8x128xf32> to vector<8xf32>
    %47 = vector.shape_cast %46 : vector<8xf32> to vector<8x1xf32>
    %48 = tpu.reciprocal %47 {approx = true} : vector<8x1xf32> -> vector<8x1xf32>
    %49 = vector.broadcast %48 : vector<8x1xf32> to vector<8x128xf32>
    %50 = arith.mulf %45, %49 : vector<8x128xf32>
    %51 = arith.truncf %50 : vector<8x128xf32> to vector<8x128xbf16>
    %cst_25 = arith.constant dense<0.000000e+00> : vector<8x16xf32>
    %52 = tpu.matmul %51, %37, %cst_25 {dimension_numbers = #tpu.dot_dimension_numbers<[1], [0], [0], [1], [0, 0, 1, 1], [], []>} : vector<8x128xbf16>, vector<128x16xbf16>, vector<8x16xf32> -> vector<8x16xf32>
    %53 = arith.truncf %52 : vector<8x16xf32> to vector<8x16xbf16>
    %c0_26 = arith.constant 0 : index
    %c16_27 = arith.constant 16 : index
    %54 = vector.load %arg14[%c0_26, %c16_27] : memref<8x32xbf16, #tpu.memory_space<vmem>>, vector<8x16xbf16>
    tpu.vector_store %arg14[%c0_26, %c16_27], %53 {strides = array<i32>} : memref<8x32xbf16, #tpu.memory_space<vmem>>, vector<8x16xbf16>,
    %55 = arith.addf %34, %50 : vector<8x128xf32>
    %c0_28 = arith.constant 0 : index
    %c0_29 = arith.constant 0 : index
    %56 = vector.load %arg14[%c0_28, %c0_29] : memref<8x32xbf16, #tpu.memory_space<vmem>>, vector<8x32xbf16>
    %c0_30 = arith.constant 0 : index
    %c0_31 = arith.constant 0 : index
    %57 = vector.load %arg9[%c0_30, %c0_31] : memref<32x32xbf16, #tpu.memory_space<vmem>>, vector<32x32xbf16>
    %cst_32 = arith.constant dense<0.000000e+00> : vector<8x32xf32>
    %58 = tpu.matmul %56, %57, %cst_32 {dimension_numbers = #tpu.dot_dimension_numbers<[1], [0], [0], [1], [0, 0, 1, 1], [], []>} : vector<8x32xbf16>, vector<32x32xbf16>, vector<8x32xf32> -> vector<8x32xf32>
    %c0_33 = arith.constant 0 : index
    %c0_34 = arith.constant 0 : index
    %59 = vector.load %arg10[%c0_33, %c0_34] : memref<1x32xf32, #tpu.memory_space<vmem>>, vector<1x32xf32>
    %60 = vector.broadcast %59 : vector<1x32xf32> to vector<8x32xf32>
    %61 = arith.addf %58, %60 : vector<8x32xf32>
    %c0_35 = arith.constant 0 : index
    %c0_36 = arith.constant 0 : index
    %c0_37 = arith.constant 0 : index
    %62 = vector.load %arg11[%c0_35, %c0_36, %c0_37] : memref<1x8x32xf32, #tpu.memory_space<vmem>>, vector<1x8x32xf32>
    %63 = vector.shape_cast %62 : vector<1x8x32xf32> to vector<8x32xf32>
    %64 = vector.shape_cast %61 : vector<8x32xf32> to vector<1x8x32xf32>
    tpu.vector_store %arg11[%c0_35, %c0_36, %c0_37], %64 {strides = array<i32>} : memref<1x8x32xf32, #tpu.memory_space<vmem>>, vector<1x8x32xf32>,
    %cst_38 = arith.constant 5.000000e-01 : f32
    %65 = vector.broadcast %cst_38 : f32 to vector<8x128xf32>
    %66 = arith.mulf %55, %65 : vector<8x128xf32>
    %c0_39 = arith.constant 0 : index
    %c0_40 = arith.constant 0 : index
    %c0_41 = arith.constant 0 : index
    %67 = vector.load %arg12[%c0_39, %c0_40, %c0_41] : memref<1x8x128xf32, #tpu.memory_space<vmem>>, vector<1x8x128xf32>
    %68 = vector.shape_cast %67 : vector<1x8x128xf32> to vector<8x128xf32>
    %69 = vector.shape_cast %66 : vector<8x128xf32> to vector<1x8x128xf32>
    tpu.vector_store %arg12[%c0_39, %c0_40, %c0_41], %69 {strides = array<i32>} : memref<1x8x128xf32, #tpu.memory_space<vmem>>, vector<1x8x128xf32>,
    return
  }
  func.func @transform_0(%arg0: i32, %arg1: i32) -> (i32, i32, i32) {
    %c0_i32 = arith.constant 0 : i32
    %c0_i32_0 = arith.constant 0 : i32
    return %arg0, %arg1, %c0_i32 : i32, i32, i32
  }
  func.func @transform_1(%arg0: i32, %arg1: i32) -> (i32, i32, i32) {
    %c0_i32 = arith.constant 0 : i32
    %c0_i32_0 = arith.constant 0 : i32
    %c0_i32_1 = arith.constant 0 : i32
    return %arg0, %c0_i32, %c0_i32_0 : i32, i32, i32
  }
  func.func @transform_2(%arg0: i32, %arg1: i32) -> (i32, i32, i32) {
    %c0_i32 = arith.constant 0 : i32
    %c0_i32_0 = arith.constant 0 : i32
    %c0_i32_1 = arith.constant 0 : i32
    return %arg0, %c0_i32, %c0_i32_0 : i32, i32, i32
  }
  func.func @transform_3(%arg0: i32, %arg1: i32) -> (i32, i32) {
    %c0_i32 = arith.constant 0 : i32
    %c0_i32_0 = arith.constant 0 : i32
    %c0_i32_1 = arith.constant 0 : i32
    return %c0_i32, %c0_i32_0 : i32, i32
  }
  func.func @transform_4(%arg0: i32, %arg1: i32) -> (i32, i32) {
    %c0_i32 = arith.constant 0 : i32
    %c0_i32_0 = arith.constant 0 : i32
    %c0_i32_1 = arith.constant 0 : i32
    return %c0_i32, %c0_i32_0 : i32, i32
  }
  func.func @transform_5(%arg0: i32, %arg1: i32) -> (i32, i32) {
    %c0_i32 = arith.constant 0 : i32
    %c0_i32_0 = arith.constant 0 : i32
    %c0_i32_1 = arith.constant 0 : i32
    return %c0_i32, %c0_i32_0 : i32, i32
  }
  func.func @transform_6(%arg0: i32, %arg1: i32) -> (i32, i32) {
    %c0_i32 = arith.constant 0 : i32
    %c0_i32_0 = arith.constant 0 : i32
    %c0_i32_1 = arith.constant 0 : i32
    return %c0_i32, %c0_i32_0 : i32, i32
  }
  func.func @transform_7(%arg0: i32, %arg1: i32) -> (i32, i32) {
    %c0_i32 = arith.constant 0 : i32
    %c0_i32_0 = arith.constant 0 : i32
    %c0_i32_1 = arith.constant 0 : i32
    return %c0_i32, %c0_i32_0 : i32, i32
  }
  func.func @transform_8(%arg0: i32, %arg1: i32) -> (i32, i32) {
    %c0_i32 = arith.constant 0 : i32
    %c0_i32_0 = arith.constant 0 : i32
    %c0_i32_1 = arith.constant 0 : i32
    return %c0_i32, %c0_i32_0 : i32, i32
  }
  func.func @transform_9(%arg0: i32, %arg1: i32) -> (i32, i32, i32) {
    %c0_i32 = arith.constant 0 : i32
    %c0_i32_0 = arith.constant 0 : i32
    return %arg0, %arg1, %c0_i32 : i32, i32, i32
  }
  func.func @transform_10(%arg0: i32, %arg1: i32) -> (i32, i32, i32) {
    %c0_i32 = arith.constant 0 : i32
    %c0_i32_0 = arith.constant 0 : i32
    return %arg0, %arg1, %c0_i32 : i32, i32, i32
  }
}

</mosaic_0001>

<llo_original>
// kernel: tpu_custom_call.1
$region0: #{tpu_custom_call.1}
  #allocation0 [shape = 'u32[]', space=smem, size = 0x4, offset = 0x4, fixed_abs, tag = 'smem constant byte address 0x4 - core index']
  #allocation1 [shape = 'u32[144,128]{1,0:T(1,128)}', space=vmem, size = 0x12000, scoped, tag = 'internal scratch']
  #allocation2 [shape = 'bf16[128,64]{1,0:T(16,128)(2,1)}', space=vmem, size = 0x8000, scoped, tag = 'scratch operand']
  #allocation3 [shape = 'bf16[8,32]{1,0:T(8,128)(2,1)}', space=vmem, size = 0x800, scoped, tag = 'scratch operand']
  %s0 = inlined_call_operand.vmem [shape: bf16[2,8,32], index: 0, kind: input, shape index: {}]
  %s1 = inlined_call_operand.vmem [shape: bf16[2,128,32], index: 1, kind: input, shape index: {}]
  %s2 = inlined_call_operand.vmem [shape: f32[2,1,128], index: 2, kind: input, shape index: {}]
  %s3 = inlined_call_operand.vmem [shape: bf16[32,32], index: 3, kind: input, shape index: {}]
  %s4 = inlined_call_operand.vmem [shape: f32[1,32], index: 4, kind: input, shape index: {}]
  %s5 = inlined_call_operand.vmem [shape: bf16[32,64], index: 5, kind: input, shape index: {}]
  %s6 = inlined_call_operand.vmem [shape: f32[1,64], index: 6, kind: input, shape index: {}]
  %s7 = inlined_call_operand.vmem [shape: bf16[32,32], index: 7, kind: input, shape index: {}]
  %s8 = inlined_call_operand.vmem [shape: f32[1,32], index: 8, kind: input, shape index: {}]
  %s9 = inlined_call_operand.hbm [shape: f32[2,8,32], index: 9, kind: output, shape index: {0}]
  %s10 = inlined_call_operand.hbm [shape: f32[2,8,128], index: 10, kind: output, shape index: {1}]
  %11 = xla_tuple %s9, %s10
  %s12 = sld [smem:[#allocation0]]
  $region81: #{tpu_custom_call.1} parent=0
    _
  %s14 = ssub.s32 1, %s12
  %s15 = scalar_select 0, %s14, %s12
  $region1: #{tpu_custom_call.1} parent=0
    #allocation4 [shape = 'u8[8192]{0}', space=vmem, size = 0x2000, scoped, tag = 'output window, operand 0']
    #allocation5 [shape = 's32[2]{0}', space=sflag, size = 0x8, scoped, tag = 'scoped memory for tpu_custom_call.1']
    #allocation6 [shape = 'u8[8192]{0}', space=vmem, size = 0x2000, scoped, tag = 'output window, operand 1']
    #allocation7 [shape = 's32[2]{0}', space=sflag, size = 0x8, scoped, tag = 'scoped memory for tpu_custom_call.1']
    %16 = vsyncpa [#allocation5], 0
    %s17 = scalar_lea.sflag [#allocation5], 1
    %18 = vsyncpa %s17, 0
    %19 = vsyncpa [#allocation7], 0
    %s20 = scalar_lea.sflag [#allocation7], 1
    %21 = vsyncpa %s20, 0
    loop: start=0, step=1, limit=4
    $region2: #{tpu_custom_call.1} parent=1 // loop_pre_header
      _
    $region3: #{tpu_custom_call.1} parent=1 // loop_header
      %s23 = sphi 0, %s27
      %p24 = scmp.ge.s32.totalorder %s23, 4
      %s30 = sphi 0, %s42
      %s31 = sphi 0, %s38
      %s32 = sphi 0, %s30
      %s33 = sphi 0, %s31
      %s34 = sphi 0, %s32
      %s35 = sphi 0, %s33
      %s47 = sphi 0, %s49
      %s50 = sphi 0, %s47
      %s51 = sphi 0, %s50
      %s67 = sphi 0, %s51
      %s73 = sphi 0, %s75
      %s76 = sphi 0, %s73
      %s77 = sphi 0, %s76
      %s93 = sphi 0, %s77
      %s99 = sphi 0, %s101
      %s102 = sphi 0, %s99
      %s103 = sphi 0, %s102
      %s119 = sphi 0, %s103
      %s123 = sphi 0, %s123
      %s125 = sphi 0, %s123
      %s126 = sphi 0, %s125
      %s140 = sphi 0, %s126
      %s144 = sphi 0, %s144
      %s146 = sphi 0, %s144
      %s147 = sphi 0, %s146
      %s161 = sphi 0, %s147
      %s165 = sphi 0, %s165
      %s167 = sphi 0, %s165
      %s168 = sphi 0, %s167
      %s182 = sphi 0, %s168
      %s186 = sphi 0, %s186
      %s188 = sphi 0, %s186
      %s189 = sphi 0, %s188
      %s203 = sphi 0, %s189
      %s207 = sphi 0, %s207
      %s209 = sphi 0, %s207
      %s210 = sphi 0, %s209
      %s224 = sphi 0, %s210
      %s228 = sphi 0, %s228
      %s230 = sphi 0, %s228
      %s231 = sphi 0, %s230
      %s245 = sphi 0, %s231
      %s253 = sphi 0, %s255
      %s256 = sphi 0, %s253
      %s257 = sphi 0, %s256
      %s273 = sphi 0, %s257
      %s281 = sphi 0, %s283
      %s284 = sphi 0, %s281
      %s285 = sphi 0, %s284
      %s301 = sphi 0, %s285
    $region4: #{tpu_custom_call.1} parent=1 // loop_header_branch
      %26 = sbr.rel (%p24) target = $region8
    $region5: #{tpu_custom_call.1} parent=1 // loop_body
      %s28 = ssub.s32 %s23, 1
      %s29 = ssub.s32 %s23, 2
      %s36 = sadd.s32 1, %s31
      %p37 = scmp.ge.s32.totalorder %s36, 1
      %s38 = scalar_select %p37, 0, %s36
      %s39 = sadd.s32 1, %s30
      %s40 = scalar_select %p37, %s39, %s30
      %p41 = scmp.ge.s32.totalorder %s40, 2
      %s42 = scalar_select %p41, 0, %s40
      %s43 = ssub.s32 %s30, %s42
      %s44 = ssub.s32 %s31, %s38
      %s45 = sor.u32 %s43, %s44
      %p46 = scmp.eq.s32.totalorder %s45, 0
      %s48 = sadd.s32 %s47, 1
      %s49 = scalar_select %p46, %s47, %s48
      %p52 = pneg %p46
      %p53 = scmp.eq.s32.totalorder %s23, 1
      %p54 = por %p52, %p53
      %p55 = scmp.ne.s32.totalorder %s47, %s50
      %p56 = scmp.eq.s32.totalorder %s23, 0
      %p57 = por %p55, %p56
      %p58 = scmp.ne.s32.totalorder %s47, %s50
      %p59 = scmp.eq.s32.totalorder %s28, 1
      %p60 = por %p58, %p59
      %p61 = scmp.ne.s32.totalorder %s50, %s51
      %p62 = scmp.eq.s32.totalorder %s28, 0
      %p63 = por %p61, %p62
      %p64 = scmp.ne.s32.totalorder %s50, %s51
      %p65 = scmp.eq.s32.totalorder %s29, 1
      %p66 = por %p64, %p65
      %p68 = scmp.ne.s32.totalorder %s51, %s67
      %p69 = scmp.eq.s32.totalorder %s29, 0
      %p70 = por %p68, %p69
      %s71 = ssub.s32 %s30, %s42
      %p72 = scmp.eq.s32.totalorder %s71, 0
      %s74 = sadd.s32 %s73, 1
      %s75 = scalar_select %p72, %s73, %s74
      %p78 = pneg %p72
      %p79 = scmp.eq.s32.totalorder %s23, 1
      %p80 = por %p78, %p79
      %p81 = scmp.ne.s32.totalorder %s73, %s76
      %p82 = scmp.eq.s32.totalorder %s23, 0
      %p83 = por %p81, %p82
      %p84 = scmp.ne.s32.totalorder %s73, %s76
      %p85 = scmp.eq.s32.totalorder %s28, 1
      %p86 = por %p84, %p85
      %p87 = scmp.ne.s32.totalorder %s76, %s77
      %p88 = scmp.eq.s32.totalorder %s28, 0
      %p89 = por %p87, %p88
      %p90 = scmp.ne.s32.totalorder %s76, %s77
      %p91 = scmp.eq.s32.totalorder %s29, 1
      %p92 = por %p90, %p91
      %p94 = scmp.ne.s32.totalorder %s77, %s93
      %p95 = scmp.eq.s32.totalorder %s29, 0
      %p96 = por %p94, %p95
      %s97 = ssub.s32 %s30, %s42
      %p98 = scmp.eq.s32.totalorder %s97, 0
      %s100 = sadd.s32 %s99, 1
      %s101 = scalar_select %p98, %s99, %s100
      %p104 = pneg %p98
      %p105 = scmp.eq.s32.totalorder %s23, 1
      %p106 = por %p104, %p105
      %p107 = scmp.ne.s32.totalorder %s99, %s102
      %p108 = scmp.eq.s32.totalorder %s23, 0
      %p109 = por %p107, %p108
      %p110 = scmp.ne.s32.totalorder %s99, %s102
      %p111 = scmp.eq.s32.totalorder %s28, 1
      %p112 = por %p110, %p111
      %p113 = scmp.ne.s32.totalorder %s102, %s103
      %p114 = scmp.eq.s32.totalorder %s28, 0
      %p115 = por %p113, %p114
      %p116 = scmp.ne.s32.totalorder %s102, %s103
      %p117 = scmp.eq.s32.totalorder %s29, 1
      %p118 = por %p116, %p117
      %p120 = scmp.ne.s32.totalorder %s103, %s119
      %p121 = scmp.eq.s32.totalorder %s29, 0
      %p122 = por %p120, %p121
      %s124 = sadd.s32 %s123, 1
      %p127 = scmp.eq.s32.totalorder %s23, 1
      %p128 = scmp.ne.s32.totalorder %s123, %s125
      %p129 = scmp.eq.s32.totalorder %s23, 0
      %p130 = por %p128, %p129
      %p131 = scmp.ne.s32.totalorder %s123, %s125
      %p132 = scmp.eq.s32.totalorder %s28, 1
      %p133 = por %p131, %p132
      %p134 = scmp.ne.s32.totalorder %s125, %s126
      %p135 = scmp.eq.s32.totalorder %s28, 0
      %p136 = por %p134, %p135
      %p137 = scmp.ne.s32.totalorder %s125, %s126
      %p138 = scmp.eq.s32.totalorder %s29, 1
      %p139 = por %p137, %p138
      %p141 = scmp.ne.s32.totalorder %s126, %s140
      %p142 = scmp.eq.s32.totalorder %s29, 0
      %p143 = por %p141, %p142
      %s145 = sadd.s32 %s144, 1
      %p148 = scmp.eq.s32.totalorder %s23, 1
      %p149 = scmp.ne.s32.totalorder %s144, %s146
      %p150 = scmp.eq.s32.totalorder %s23, 0
      %p151 = por %p149, %p150
      %p152 = scmp.ne.s32.totalorder %s144, %s146
      %p153 = scmp.eq.s32.totalorder %s28, 1
      %p154 = por %p152, %p153
      %p155 = scmp.ne.s32.totalorder %s146, %s147
      %p156 = scmp.eq.s32.totalorder %s28, 0
      %p157 = por %p155, %p156
      %p158 = scmp.ne.s32.totalorder %s146, %s147
      %p159 = scmp.eq.s32.totalorder %s29, 1
      %p160 = por %p158, %p159
      %p162 = scmp.ne.s32.totalorder %s147, %s161
      %p163 = scmp.eq.s32.totalorder %s29, 0
      %p164 = por %p162, %p163
      %s166 = sadd.s32 %s165, 1
      %p169 = scmp.eq.s32.totalorder %s23, 1
      %p170 = scmp.ne.s32.totalorder %s165, %s167
      %p171 = scmp.eq.s32.totalorder %s23, 0
      %p172 = por %p170, %p171
      %p173 = scmp.ne.s32.totalorder %s165, %s167
      %p174 = scmp.eq.s32.totalorder %s28, 1
      %p175 = por %p173, %p174
      %p176 = scmp.ne.s32.totalorder %s167, %s168
      %p177 = scmp.eq.s32.totalorder %s28, 0
      %p178 = por %p176, %p177
      %p179 = scmp.ne.s32.totalorder %s167, %s168
      %p180 = scmp.eq.s32.totalorder %s29, 1
      %p181 = por %p179, %p180
      %p183 = scmp.ne.s32.totalorder %s168, %s182
      %p184 = scmp.eq.s32.totalorder %s29, 0
      %p185 = por %p183, %p184
      %s187 = sadd.s32 %s186, 1
      %p190 = scmp.eq.s32.totalorder %s23, 1
      %p191 = scmp.ne.s32.totalorder %s186, %s188
      %p192 = scmp.eq.s32.totalorder %s23, 0
      %p193 = por %p191, %p192
      %p194 = scmp.ne.s32.totalorder %s186, %s188
      %p195 = scmp.eq.s32.totalorder %s28, 1
      %p196 = por %p194, %p195
      %p197 = scmp.ne.s32.totalorder %s188, %s189
      %p198 = scmp.eq.s32.totalorder %s28, 0
      %p199 = por %p197, %p198
      %p200 = scmp.ne.s32.totalorder %s188, %s189
      %p201 = scmp.eq.s32.totalorder %s29, 1
      %p202 = por %p200, %p201
      %p204 = scmp.ne.s32.totalorder %s189, %s203
      %p205 = scmp.eq.s32.totalorder %s29, 0
      %p206 = por %p204, %p205
      %s208 = sadd.s32 %s207, 1
      %p211 = scmp.eq.s32.totalorder %s23, 1
      %p212 = scmp.ne.s32.totalorder %s207, %s209
      %p213 = scmp.eq.s32.totalorder %s23, 0
      %p214 = por %p212, %p213
      %p215 = scmp.ne.s32.totalorder %s207, %s209
      %p216 = scmp.eq.s32.totalorder %s28, 1
      %p217 = por %p215, %p216
      %p218 = scmp.ne.s32.totalorder %s209, %s210
      %p219 = scmp.eq.s32.totalorder %s28, 0
      %p220 = por %p218, %p219
      %p221 = scmp.ne.s32.totalorder %s209, %s210
      %p222 = scmp.eq.s32.totalorder %s29, 1
      %p223 = por %p221, %p222
      %p225 = scmp.ne.s32.totalorder %s210, %s224
      %p226 = scmp.eq.s32.totalorder %s29, 0
      %p227 = por %p225, %p226
      %s229 = sadd.s32 %s228, 1
      %p232 = scmp.eq.s32.totalorder %s23, 1
      %p233 = scmp.ne.s32.totalorder %s228, %s230
      %p234 = scmp.eq.s32.totalorder %s23, 0
      %p235 = por %p233, %p234
      %p236 = scmp.ne.s32.totalorder %s228, %s230
      %p237 = scmp.eq.s32.totalorder %s28, 1
      %p238 = por %p236, %p237
      %p239 = scmp.ne.s32.totalorder %s230, %s231
      %p240 = scmp.eq.s32.totalorder %s28, 0
      %p241 = por %p239, %p240
      %p242 = scmp.ne.s32.totalorder %s230, %s231
      %p243 = scmp.eq.s32.totalorder %s29, 1
      %p244 = por %p242, %p243
      %p246 = scmp.ne.s32.totalorder %s231, %s245
      %p247 = scmp.eq.s32.totalorder %s29, 0
      %p248 = por %p246, %p247
      %s249 = ssub.s32 %s30, %s42
      %s250 = ssub.s32 %s31, %s38
      %s251 = sor.u32 %s249, %s250
      %p252 = scmp.eq.s32.totalorder %s251, 0
      %s254 = sadd.s32 %s253, 1
      %s255 = scalar_select %p252, %s253, %s254
      %p258 = pneg %p252
      %p259 = scmp.eq.s32.totalorder %s23, 1
      %p260 = por %p258, %p259
      %p261 = scmp.ne.s32.totalorder %s253, %s256
      %p262 = scmp.eq.s32.totalorder %s23, 0
      %p263 = por %p261, %p262
      %p264 = scmp.ne.s32.totalorder %s253, %s256
      %p265 = scmp.eq.s32.totalorder %s28, 1
      %p266 = por %p264, %p265
      %p267 = scmp.ne.s32.totalorder %s256, %s257
      %p268 = scmp.eq.s32.totalorder %s28, 0
      %p269 = por %p267, %p268
      %p270 = scmp.ne.s32.totalorder %s256, %s257
      %p271 = scmp.eq.s32.totalorder %s29, 1
      %p272 = por %p270, %p271
      %p274 = scmp.ne.s32.totalorder %s257, %s273
      %p275 = scmp.eq.s32.totalorder %s29, 0
      %p276 = por %p274, %p275
      %s277 = ssub.s32 %s30, %s42
      %s278 = ssub.s32 %s31, %s38
      %s279 = sor.u32 %s277, %s278
      %p280 = scmp.eq.s32.totalorder %s279, 0
      %s282 = sadd.s32 %s281, 1
      %s283 = scalar_select %p280, %s281, %s282
      %p286 = pneg %p280
      %p287 = scmp.eq.s32.totalorder %s23, 1
      %p288 = por %p286, %p287
      %p289 = scmp.ne.s32.totalorder %s281, %s284
      %p290 = scmp.eq.s32.totalorder %s23, 0
      %p291 = por %p289, %p290
      %p292 = scmp.ne.s32.totalorder %s281, %s284
      %p293 = scmp.eq.s32.totalorder %s28, 1
      %p294 = por %p292, %p293
      %p295 = scmp.ne.s32.totalorder %s284, %s285
      %p296 = scmp.eq.s32.totalorder %s28, 0
      %p297 = por %p295, %p296
      %p298 = scmp.ne.s32.totalorder %s284, %s285
      %p299 = scmp.eq.s32.totalorder %s29, 1
      %p300 = por %p298, %p299
      %p302 = scmp.ne.s32.totalorder %s285, %s301
      %p303 = scmp.eq.s32.totalorder %s29, 0
      %p304 = por %p302, %p303
      %p305 = scmp.le.s32.totalorder 1, %s23
      %p306 = scmp.lt.s32.totalorder %s23, 3
      %p307 = pnand %p305, %p306
      %p308 = pneg %p307
      // Predicated region
      $region9: #{tpu_custom_call.1} parent=5 // pred_check
        _
      $region10: #{tpu_custom_call.1} parent=5 // pred_check_branch
        %310 = sbr.rel (%p307) target = $region12
      $region11: #{tpu_custom_call.1} parent=5 // pred_region
        %s311 = ssub.s32 %s23, 1
        // Predicated region
        $region13: #{tpu_custom_call.1} parent=11 // pred_check
          %p312 = pneg %p136
        $region14: #{tpu_custom_call.1} parent=11 // pred_check_branch
          %314 = sbr.rel (%p312) target = $region16
        $region15: #{tpu_custom_call.1} parent=11 // pred_region
          _
        $region16: #{tpu_custom_call.1} parent=11 // pred_fallthru
          _
        // Predicated region
        $region17: #{tpu_custom_call.1} parent=11 // pred_check
          %p315 = pneg %p157
        $region18: #{tpu_custom_call.1} parent=11 // pred_check_branch
          %317 = sbr.rel (%p315) target = $region20
        $region19: #{tpu_custom_call.1} parent=11 // pred_region
          _
        $region20: #{tpu_custom_call.1} parent=11 // pred_fallthru
          _
        // Predicated region
        $region21: #{tpu_custom_call.1} parent=11 // pred_check
          %p318 = pneg %p178
        $region22: #{tpu_custom_call.1} parent=11 // pred_check_branch
          %320 = sbr.rel (%p318) target = $region24
        $region23: #{tpu_custom_call.1} parent=11 // pred_region
          _
        $region24: #{tpu_custom_call.1} parent=11 // pred_fallthru
          _
        // Predicated region
        $region25: #{tpu_custom_call.1} parent=11 // pred_check
          %p321 = pneg %p199
        $region26: #{tpu_custom_call.1} parent=11 // pred_check_branch
          %323 = sbr.rel (%p321) target = $region28
        $region27: #{tpu_custom_call.1} parent=11 // pred_region
          _
        $region28: #{tpu_custom_call.1} parent=11 // pred_fallthru
          _
        // Predicated region
        $region29: #{tpu_custom_call.1} parent=11 // pred_check
          %p324 = pneg %p220
        $region30: #{tpu_custom_call.1} parent=11 // pred_check_branch
          %326 = sbr.rel (%p324) target = $region32
        $region31: #{tpu_custom_call.1} parent=11 // pred_region
          _
        $region32: #{tpu_custom_call.1} parent=11 // pred_fallthru
          _
        // Predicated region
        $region33: #{tpu_custom_call.1} parent=11 // pred_check
          %p327 = pneg %p241
        $region34: #{tpu_custom_call.1} parent=11 // pred_check_branch
          %329 = sbr.rel (%p327) target = $region36
        $region35: #{tpu_custom_call.1} parent=11 // pred_region
          _
        $region36: #{tpu_custom_call.1} parent=11 // pred_fallthru
          _
      $region12: #{tpu_custom_call.1} parent=5 // pred_fallthru
        _
      %p330 = scmp.lt.s32.totalorder %s23, 2
      // Predicated region
      $region37: #{tpu_custom_call.1} parent=5 // pred_check
        %p331 = pneg %p330
      $region38: #{tpu_custom_call.1} parent=5 // pred_check_branch
        %333 = sbr.rel (%p331) target = $region40
      $region39: #{tpu_custom_call.1} parent=5 // pred_region
        // Predicated region
        $region41: #{tpu_custom_call.1} parent=39 // pred_check
          %p334 = pneg %p57
        $region42: #{tpu_custom_call.1} parent=39 // pred_check_branch
          %336 = sbr.rel (%p334) target = $region44
        $region43: #{tpu_custom_call.1} parent=39 // pred_region
          %p337 = scmp.lt.s32.totalorder %s30, 1
          %s338 = scalar_select %p337, %s30, 1
          %p339 = scmp.lt.s32.totalorder %s31, 0
          %s340 = scalar_select %p339, %s31, 0
          %s341 = sadd.s32 %s340, %s338
          %s342 = smul.addr %s341, 4
          %s343 = scalar_lea.vmem %s0, %s342
        $region44: #{tpu_custom_call.1} parent=39 // pred_fallthru
          _
        // Predicated region
        $region45: #{tpu_custom_call.1} parent=39 // pred_check
          %p344 = pneg %p83
        $region46: #{tpu_custom_call.1} parent=39 // pred_check_branch
          %346 = sbr.rel (%p344) target = $region48
        $region47: #{tpu_custom_call.1} parent=39 // pred_region
          %p347 = scmp.lt.s32.totalorder %s30, 1
          %s348 = scalar_select %p347, %s30, 1
          %s349 = smul.addr %s348, 16
          %s350 = smul.addr %s349, 4
          %s351 = scalar_lea.vmem %s1, %s350
        $region48: #{tpu_custom_call.1} parent=39 // pred_fallthru
          _
        // Predicated region
        $region49: #{tpu_custom_call.1} parent=39 // pred_check
          %p352 = pneg %p109
        $region50: #{tpu_custom_call.1} parent=39 // pred_check_branch
          %354 = sbr.rel (%p352) target = $region52
        $region51: #{tpu_custom_call.1} parent=39 // pred_region
          %p355 = scmp.lt.s32.totalorder %s30, 1
          %s356 = scalar_select %p355, %s30, 1
          %s357 = scalar_lea.vmem %s2, %s356
        $region52: #{tpu_custom_call.1} parent=39 // pred_fallthru
          _
      $region40: #{tpu_custom_call.1} parent=5 // pred_fallthru
        _
      %p358 = scmp.le.s32.totalorder 1, %s23
      %p359 = scmp.lt.s32.totalorder %s23, 3
      %p360 = pnand %p358, %p359
      %p361 = pneg %p360
      // Predicated region
      $region53: #{tpu_custom_call.1} parent=5 // pred_check
        _
      $region54: #{tpu_custom_call.1} parent=5 // pred_check_branch
        %363 = sbr.rel (%p360) target = $region56
      $region55: #{tpu_custom_call.1} parent=5 // pred_region
        %s364 = ssub.s32 %s23, 1
        %p365 = scmp.lt.s32.totalorder %s32, 1
        %s366 = scalar_select %p365, %s32, 1
        %p367 = scmp.lt.s32.totalorder %s33, 0
        %s368 = scalar_select %p367, %s33, 0
        %s369 = sadd.s32 %s368, %s366
        %s370 = smul.addr %s369, 4
        %s371 = scalar_lea.vmem %s0, %s370
        %p372 = pneg %p63
        %p373 = pneg %p60
        %p374 = scmp.lt.s32.totalorder %s32, 1
        %s375 = scalar_select %p374, %s32, 1
        %s376 = smul.addr %s375, 16
        %s377 = smul.addr %s376, 4
        %s378 = scalar_lea.vmem %s1, %s377
        %p379 = pneg %p89
        %p380 = pneg %p86
        %p381 = scmp.lt.s32.totalorder %s32, 1
        %s382 = scalar_select %p381, %s32, 1
        %s383 = scalar_lea.vmem %s2, %s382
        %p384 = pneg %p115
        %p385 = pneg %p112
        %p386 = pneg %p136
        %p387 = pneg %p133
        %p388 = pneg %p157
        %p389 = pneg %p154
        %p390 = pneg %p178
        %p391 = pneg %p175
        %p392 = pneg %p199
        %p393 = pneg %p196
        %p394 = pneg %p220
        %p395 = pneg %p217
        %p396 = pneg %p241
        %p397 = pneg %p238
        %p398 = pneg %p269
        %p399 = pneg %p266
        %s400 = sand.u32 %s256, 1
        %s401 = scalar_lea.sflag [#allocation5], %s400
        %s402 = sand.u32 %s256, 1
        %s403 = smul.addr %s402, 8
        %s404 = scalar_lea.vmem [#allocation4], %s403
        %p405 = pneg %p297
        %p406 = pneg %p294
        %s407 = sand.u32 %s284, 1
        %s408 = scalar_lea.sflag [#allocation7], %s407
        %s409 = sand.u32 %s284, 1
        %s410 = smul.addr %s409, 8
        %s411 = scalar_lea.vmem [#allocation6], %s410
        %p412 = scmp.lt.s32.totalorder %s32, 1
        %s413 = scalar_select %p412, %s32, 1
        %p414 = scmp.lt.s32.totalorder %s33, 0
        %s415 = scalar_select %p414, %s33, 0
        %s416 = sadd.s32 %s415, %s413
        %s417 = smul.addr %s416, 4
        %s418 = scalar_lea.vmem %s0, %s417
        %p419 = scmp.lt.s32.totalorder %s32, 1
        %s420 = scalar_select %p419, %s32, 1
        %s421 = smul.addr %s420, 16
        %s422 = smul.addr %s421, 4
        %s423 = scalar_lea.vmem %s1, %s422
        %p424 = scmp.lt.s32.totalorder %s32, 1
        %s425 = scalar_select %p424, %s32, 1
        %s426 = scalar_lea.vmem %s2, %s425
        %p428 = scmp.eq.s32.totalorder %s33, 0
        // Predicated region
        $region57: #{tpu_custom_call.1} parent=55 // pred_check
          %p429 = pneg %p428
        $region58: #{tpu_custom_call.1} parent=55 // pred_check_branch
          %431 = sbr.rel (%p429) target = $region60
        $region59: #{tpu_custom_call.1} parent=55 // pred_region
          %v432 = vld [vmem:[%s423] sm:$0xf]
          %v433 = vld [vmem:[%s423 + $0x4] sm:$0xf]
          %v434 = vld [vmem:[%s423 + $0x8] sm:$0xf]
          %v435 = vld [vmem:[%s423 + $0xc] sm:$0xf]
          %v436 = vld [vmem:[%s423 + $0x10] sm:$0xf]
          %v437 = vld [vmem:[%s423 + $0x14] sm:$0xf]
          %v438 = vld [vmem:[%s423 + $0x18] sm:$0xf]
          %v439 = vld [vmem:[%s423 + $0x1c] sm:$0xf]
          %v440 = vld [vmem:[%s423 + $0x20] sm:$0xf]
          %v441 = vld [vmem:[%s423 + $0x24] sm:$0xf]
          %v442 = vld [vmem:[%s423 + $0x28] sm:$0xf]
          %v443 = vld [vmem:[%s423 + $0x2c] sm:$0xf]
          %v444 = vld [vmem:[%s423 + $0x30] sm:$0xf]
          %v445 = vld [vmem:[%s423 + $0x34] sm:$0xf]
          %v446 = vld [vmem:[%s423 + $0x38] sm:$0xf]
          %v447 = vld [vmem:[%s423 + $0x3c] sm:$0xf]
          %v448 = vld [vmem:[%s5] sm:$0xf]
          %v449 = vld [vmem:[%s5 + $0x4] sm:$0xf]
          %v450 = vld [vmem:[%s5 + $0x8] sm:$0xf]
          %v451 = vld [vmem:[%s5 + $0xc] sm:$0xf]
          %v452 = vld [vmem:[%s6] sm:$0x1]
          %v454 = vlaneseq
          %v455 = vshrl.u32 %v454, 7
          %v456 = vsub.s32 0, %v455
          %v457 = vrot.slane %v452, %v456
          %v475 = vunpack.c.l.b16 %v432
          %v476 = vunpack.c.l.b16 %v433
          %v477 = vunpack.c.l.b16 %v434
          %v478 = vunpack.c.l.b16 %v435
          %v479 = vunpack.c.l.b16 %v436
          %v480 = vunpack.c.l.b16 %v437
          %v481 = vunpack.c.l.b16 %v438
          %v482 = vunpack.c.l.b16 %v439
          %v483 = vunpack.c.l.b16 %v440
          %v484 = vunpack.c.l.b16 %v441
          %v485 = vunpack.c.l.b16 %v442
          %v486 = vunpack.c.l.b16 %v443
          %v487 = vunpack.c.l.b16 %v444
          %v488 = vunpack.c.l.b16 %v445
          %v489 = vunpack.c.l.b16 %v446
          %v490 = vunpack.c.l.b16 %v447
          %v491 = vpack.c.b16 %v476, %v475
          %v492 = vpack.c.b16 %v478, %v477
          %v493 = vpack.c.b16 %v480, %v479
          %v494 = vpack.c.b16 %v482, %v481
          %v495 = vpack.c.b16 %v484, %v483
          %v496 = vpack.c.b16 %v486, %v485
          %v497 = vpack.c.b16 %v488, %v487
          %v498 = vpack.c.b16 %v490, %v489
          %v503 = vunpack.c.l.b16 %v448
          %v504 = vunpack.c.l.b16 %v449
          %v505 = vunpack.c.l.b16 %v450
          %v506 = vunpack.c.l.b16 %v451
          %v507 = vpack.c.b16 %v504, %v503
          %v508 = vpack.c.b16 %v506, %v505
          %vm511 = vcmask 261120
          %v513 = vsel %vm511, %v491, 0
          %v516 = vsel %vm511, %v492, 0
          %v519 = vsel %vm511, %v493, 0
          %v522 = vsel %vm511, %v494, 0
          %v525 = vsel %vm511, %v495, 0
          %v528 = vsel %vm511, %v496, 0
          %v531 = vsel %vm511, %v497, 0
          %v534 = vsel %vm511, %v498, 0
          %536 = vmatprep.subr.bf16.mxu0 0
          %537 = vmatpush1.bf16.msra.mxu0 %v507
          %538 = vmatprep.subr.bf16.mxu0 0
          %539 = vmatpush1.bf16.msra.mxu0 %v508
          %540 = vmatprep.subr.bf16.mxu0 0
          %541 = vmatpush1.bf16.msra.mxu0 0
          %542 = vmatprep.subr.bf16.mxu0 0
          %543 = vmatpush1.bf16.msra.mxu0 0
          %544 = vmatprep.subr.bf16.mxu0 0
          %545 = vmatpush1.bf16.msra.mxu0 0
          %546 = vmatprep.subr.bf16.mxu0 0
          %547 = vmatpush1.bf16.msra.mxu0 0
          %548 = vmatprep.subr.bf16.mxu0 0
          %549 = vmatpush1.bf16.msra.mxu0 0
          %550 = vmatprep.subr.bf16.mxu0 0
          %551 = vmatpush1.bf16.msra.mxu0 0
          %552 = vmatprep.subr.bf16.mxu0 0
          %553 = vmatpush1.bf16.msra.mxu0 0
          %554 = vmatprep.subr.bf16.mxu0 0
          %555 = vmatpush1.bf16.msra.mxu0 0
          %556 = vmatprep.subr.bf16.mxu0 0
          %557 = vmatpush1.bf16.msra.mxu0 0
          %558 = vmatprep.subr.bf16.mxu0 0
          %559 = vmatpush1.bf16.msra.mxu0 0
          %560 = vmatprep.subr.bf16.mxu0 0
          %561 = vmatpush1.bf16.msra.mxu0 0
          %562 = vmatprep.subr.bf16.mxu0 0
          %563 = vmatpush1.bf16.msra.mxu0 0
          %564 = vmatprep.subr.bf16.mxu0 0
          %565 = vmatpush1.bf16.msra.mxu0 0
          %566 = vmatprep.subr.bf16.mxu0 0
          %567 = vmatpush1.bf16.msra.mxu0 0
          %568 = vmatprep.mubr.bf16.mxu0 0
          %569 = vmatmul.mubr.bf16.gmra.mrb[0].mxu0 %v513
          %v570 = vpop.f32.mrb[0].mxu0
          %v571 = vadd.f32 %v457, %v570
          %v572 = vpop.f32.mrb[0].mxu0
          %v573 = vpop.f32.mrb[0].mxu0
          %v574 = vadd.f32 %v457, %v573
          %v575 = vpop.f32.mrb[0].mxu0
          %576 = vmatprep.mubr.bf16.mxu0 0
          %577 = vmatmul.mubr.bf16.gmra.mrb[0].mxu0 %v516
          %v578 = vpop.f32.mrb[0].mxu0
          %v579 = vadd.f32 %v457, %v578
          %v580 = vpop.f32.mrb[0].mxu0
          %v581 = vpop.f32.mrb[0].mxu0
          %v582 = vadd.f32 %v457, %v581
          %v583 = vpop.f32.mrb[0].mxu0
          %584 = vmatprep.mubr.bf16.mxu0 0
          %585 = vmatmul.mubr.bf16.gmra.mrb[0].mxu0 %v519
          %v586 = vpop.f32.mrb[0].mxu0
          %v587 = vadd.f32 %v457, %v586
          %v588 = vpop.f32.mrb[0].mxu0
          %v589 = vpop.f32.mrb[0].mxu0
          %v590 = vadd.f32 %v457, %v589
          %v591 = vpop.f32.mrb[0].mxu0
          %592 = vmatprep.mubr.bf16.mxu0 0
          %593 = vmatmul.mubr.bf16.gmra.mrb[0].mxu0 %v522
          %v594 = vpop.f32.mrb[0].mxu0
          %v595 = vadd.f32 %v457, %v594
          %v596 = vpop.f32.mrb[0].mxu0
          %v597 = vpop.f32.mrb[0].mxu0
          %v598 = vadd.f32 %v457, %v597
          %v599 = vpop.f32.mrb[0].mxu0
          %600 = vmatprep.mubr.bf16.mxu0 0
          %601 = vmatmul.mubr.bf16.gmra.mrb[0].mxu0 %v525
          %v602 = vpop.f32.mrb[0].mxu0
          %v603 = vadd.f32 %v457, %v602
          %v604 = vpop.f32.mrb[0].mxu0
          %v605 = vpop.f32.mrb[0].mxu0
          %v606 = vadd.f32 %v457, %v605
          %v607 = vpop.f32.mrb[0].mxu0
          %608 = vmatprep.mubr.bf16.mxu0 0
          %609 = vmatmul.mubr.bf16.gmra.mrb[0].mxu0 %v528
          %v610 = vpop.f32.mrb[0].mxu0
          %v611 = vadd.f32 %v457, %v610
          %v612 = vpop.f32.mrb[0].mxu0
          %v613 = vpop.f32.mrb[0].mxu0
          %v614 = vadd.f32 %v457, %v613
          %v615 = vpop.f32.mrb[0].mxu0
          %616 = vmatprep.mubr.bf16.mxu0 0
          %617 = vmatmul.mubr.bf16.gmra.mrb[0].mxu0 %v531
          %v618 = vpop.f32.mrb[0].mxu0
          %v619 = vadd.f32 %v457, %v618
          %v620 = vpop.f32.mrb[0].mxu0
          %v621 = vpop.f32.mrb[0].mxu0
          %v622 = vadd.f32 %v457, %v621
          %v623 = vpop.f32.mrb[0].mxu0
          %624 = vmatprep.mubr.bf16.mxu0 0
          %625 = vmatmul.mubr.bf16.gmra.mrb[0].mxu0 %v534
          %v626 = vpop.f32.mrb[0].mxu0
          %v627 = vadd.f32 %v457, %v626
          %v628 = vpop.f32.mrb[0].mxu0
          %v629 = vpop.f32.mrb[0].mxu0
          %v630 = vadd.f32 %v457, %v629
          %v631 = vpop.f32.mrb[0].mxu0
          %632 = vdwg.mxu0
          %v633 = vpack.c.bf16 %v574, %v571
          %v634 = vpack.c.bf16 %v582, %v579
          %v635 = vpack.c.bf16 %v590, %v587
          %v636 = vpack.c.bf16 %v598, %v595
          %v637 = vpack.c.bf16 %v606, %v603
          %v638 = vpack.c.bf16 %v614, %v611
          %v639 = vpack.c.bf16 %v622, %v619
          %v640 = vpack.c.bf16 %v630, %v627
          %vm641 = vcmask 523264
          %642 = vst.msk [vmem:[#allocation2] sm:$0xff] %vm641, %v633
          %643 = vst.msk [vmem:[#allocation2 + $0x8] sm:$0xff] %vm641, %v634
          %644 = vst.msk [vmem:[#allocation2 + $0x10] sm:$0xff] %vm641, %v635
          %645 = vst.msk [vmem:[#allocation2 + $0x18] sm:$0xff] %vm641, %v636
          %646 = vst.msk [vmem:[#allocation2 + $0x20] sm:$0xff] %vm641, %v637
          %647 = vst.msk [vmem:[#allocation2 + $0x28] sm:$0xff] %vm641, %v638
          %648 = vst.msk [vmem:[#allocation2 + $0x30] sm:$0xff] %vm641, %v639
          %649 = vst.msk [vmem:[#allocation2 + $0x38] sm:$0xff] %vm641, %v640
        $region60: #{tpu_custom_call.1} parent=55 // pred_fallthru
          _
        %v650 = vld [vmem:[%s418] sm:$0xf]
        %v651 = vld [vmem:[%s426] sm:$0x1]
        %v652 = vld [vmem:[%s3] sm:$0xf]
        %v653 = vld [vmem:[%s3 + $0x4] sm:$0xf]
        %v654 = vld [vmem:[%s3 + $0x8] sm:$0xf]
        %v655 = vld [vmem:[%s3 + $0xc] sm:$0xf]
        %v656 = vld [vmem:[%s4] sm:$0x1]
        %v658 = vlaneseq
        %v659 = vshrl.u32 %v658, 7
        %v660 = vsub.s32 0, %v659
        %v661 = vrot.slane %v656, %v660
        %v667 = vunpack.c.l.b16 %v652
        %v668 = vunpack.c.l.b16 %v653
        %v669 = vunpack.c.l.b16 %v654
        %v670 = vunpack.c.l.b16 %v655
        %v671 = vpack.c.b16 %v668, %v667
        %v672 = vpack.c.b16 %v670, %v669
        %vm675 = vcmask 261120
        %v677 = vsel %vm675, %v650, 0
        %679 = vmatprep.subr.bf16.mxu0 0
        %680 = vmatpush1.bf16.msra.mxu0 %v671
        %681 = vmatprep.subr.bf16.mxu0 0
        %682 = vmatpush1.bf16.msra.mxu0 %v672
        %683 = vmatprep.subr.bf16.mxu0 0
        %684 = vmatpush1.bf16.msra.mxu0 0
        %685 = vmatprep.subr.bf16.mxu0 0
        %686 = vmatpush1.bf16.msra.mxu0 0
        %687 = vmatprep.subr.bf16.mxu0 0
        %688 = vmatpush1.bf16.msra.mxu0 0
        %689 = vmatprep.subr.bf16.mxu0 0
        %690 = vmatpush1.bf16.msra.mxu0 0
        %691 = vmatprep.subr.bf16.mxu0 0
        %692 = vmatpush1.bf16.msra.mxu0 0
        %693 = vmatprep.subr.bf16.mxu0 0
        %694 = vmatpush1.bf16.msra.mxu0 0
        %695 = vmatprep.subr.bf16.mxu0 0
        %696 = vmatpush1.bf16.msra.mxu0 0
        %697 = vmatprep.subr.bf16.mxu0 0
        %698 = vmatpush1.bf16.msra.mxu0 0
        %699 = vmatprep.subr.bf16.mxu0 0
        %700 = vmatpush1.bf16.msra.mxu0 0
        %701 = vmatprep.subr.bf16.mxu0 0
        %702 = vmatpush1.bf16.msra.mxu0 0
        %703 = vmatprep.subr.bf16.mxu0 0
        %704 = vmatpush1.bf16.msra.mxu0 0
        %705 = vmatprep.subr.bf16.mxu0 0
        %706 = vmatpush1.bf16.msra.mxu0 0
        %707 = vmatprep.subr.bf16.mxu0 0
        %708 = vmatpush1.bf16.msra.mxu0 0
        %709 = vmatprep.subr.bf16.mxu0 0
        %710 = vmatpush1.bf16.msra.mxu0 0
        %711 = vmatprep.mubr.bf16.mxu0 0
        %712 = vmatmul.mubr.bf16.gmra.mrb[0].mxu0 %v677
        %v713 = vpop.f32.mrb[0].mxu0
        %v714 = vadd.f32 %v661, %v713
        %v715 = vpop.f32.mrb[0].mxu0
        %v716 = vpop.f32.mrb[0].mxu0
        %v717 = vpop.f32.mrb[0].mxu0
        %718 = vdwg.mxu0
        %v719 = vpack.c.bf16 %v714, %v714
        %v720 = vld [vmem:[#allocation2] sm:$0xff]
        %v721 = vld [vmem:[#allocation2 + $0x8] sm:$0xff]
        %v722 = vld [vmem:[#allocation2 + $0x10] sm:$0xff]
        %v723 = vld [vmem:[#allocation2 + $0x18] sm:$0xff]
        %v724 = vld [vmem:[#allocation2 + $0x20] sm:$0xff]
        %v725 = vld [vmem:[#allocation2 + $0x28] sm:$0xff]
        %v726 = vld [vmem:[#allocation2 + $0x30] sm:$0xff]
        %v727 = vld [vmem:[#allocation2 + $0x38] sm:$0xff]
        %v729 = vlaneseq
        %v730 = vshrl.u32 %v729, 7
        %v731 = vsub.s32 0, %v730
        %v732 = vrot.slane %v651, %v731
        %vm734 = vcmask 130048
        %v736 = vsel %vm734, %v719, 0
        %v739 = vsel %vm734, %v720, 0
        %v742 = vsel %vm734, %v721, 0
        %v745 = vsel %vm734, %v722, 0
        %v748 = vsel %vm734, %v723, 0
        %v751 = vsel %vm734, %v724, 0
        %v754 = vsel %vm734, %v725, 0
        %v757 = vsel %vm734, %v726, 0
        %v760 = vsel %vm734, %v727, 0
        %762 = vmatprep.subr.bf16.mxu0 0
        %763 = vmatpush1.bf16.xpose.msra.mxu0 %v739
        %764 = vmatprep.subr.bf16.mxu0 0
        %765 = vmatpush1.bf16.xpose.msra.mxu0 %v742
        %766 = vmatprep.subr.bf16.mxu0 0
        %767 = vmatpush1.bf16.xpose.msra.mxu0 %v745
        %768 = vmatprep.subr.bf16.mxu0 0
        %769 = vmatpush1.bf16.xpose.msra.mxu0 %v748
        %770 = vmatprep.subr.bf16.mxu0 0
        %771 = vmatpush1.bf16.xpose.msra.mxu0 %v751
        %772 = vmatprep.subr.bf16.mxu0 0
        %773 = vmatpush1.bf16.xpose.msra.mxu0 %v754
        %774 = vmatprep.subr.bf16.mxu0 0
        %775 = vmatpush1.bf16.xpose.msra.mxu0 %v757
        %776 = vmatprep.subr.bf16.mxu0 0
        %777 = vmatpush1.bf16.xpose.msra.mxu0 %v760
        %778 = vmatprep.subr.bf16.mxu0 0
        %779 = vmatpush1.bf16.xpose.msra.mxu0 0
        %780 = vmatprep.subr.bf16.mxu0 0
        %781 = vmatpush1.bf16.xpose.msra.mxu0 0
        %782 = vmatprep.subr.bf16.mxu0 0
        %783 = vmatpush1.bf16.xpose.msra.mxu0 0
        %784 = vmatprep.subr.bf16.mxu0 0
        %785 = vmatpush1.bf16.xpose.msra.mxu0 0
        %786 = vmatprep.subr.bf16.mxu0 0
        %787 = vmatpush1.bf16.xpose.msra.mxu0 0
        %788 = vmatprep.subr.bf16.mxu0 0
        %789 = vmatpush1.bf16.xpose.msra.mxu0 0
        %790 = vmatprep.subr.bf16.mxu0 0
        %791 = vmatpush1.bf16.xpose.msra.mxu0 0
        %792 = vmatprep.subr.bf16.mxu0 0
        %793 = vmatpush1.bf16.xpose.msra.mxu0 0
        %794 = vmatprep.mubr.bf16.mxu0 0
        %795 = vmatmul.mubr.bf16.gmra.mrb[0].mxu0 %v736
        %v796 = vpop.f32.mrb[0].mxu0
        %v797 = vadd.f32 %v732, %v796
        %v798 = vpop.f32.mrb[0].mxu0
        %v799 = vpop.f32.mrb[0].mxu0
        %v800 = vpop.f32.mrb[0].mxu0
        %801 = vdwg.mxu0
        %802 = vmax.xlane.f32.xlu0 %v797
        %v803 = vpop.xlane.xlu0 %802
        %v804 = vsub.f32 %v797, %v803
        %v805 = vmul.f32 %v804, 1.442695
        %v806 = vpow.pop %v805
        %807 = vadd.xlane.f32.xlu0 %v806
        %v808 = vpop.xlane.xlu0 %807
        %v809 = vrcp.pop %v808
        %v810 = vmul.f32 %v806, %v809
        %v811 = vpack.c.bf16 %v810, %v810
        %820 = vrot.lane.b32.xlu0 %v720, 96
        %v821 = vpop.permute.xlu0 %820
        %822 = vrot.lane.b32.xlu0 %v721, 96
        %v823 = vpop.permute.xlu0 %822
        %824 = vrot.lane.b32.xlu0 %v722, 96
        %v825 = vpop.permute.xlu0 %824
        %826 = vrot.lane.b32.xlu0 %v723, 96
        %v827 = vpop.permute.xlu0 %826
        %828 = vrot.lane.b32.xlu0 %v724, 96
        %v829 = vpop.permute.xlu0 %828
        %830 = vrot.lane.b32.xlu0 %v725, 96
        %v831 = vpop.permute.xlu0 %830
        %832 = vrot.lane.b32.xlu0 %v726, 96
        %v833 = vpop.permute.xlu0 %832
        %834 = vrot.lane.b32.xlu0 %v727, 96
        %v835 = vpop.permute.xlu0 %834
        %844 = vmatprep.subr.bf16.mxu0 0
        %845 = vmatpush1.bf16.msra.mxu0 %v821
        %846 = vmatprep.subr.bf16.mxu0 0
        %847 = vmatpush1.bf16.msra.mxu0 %v823
        %848 = vmatprep.subr.bf16.mxu0 0
        %849 = vmatpush1.bf16.msra.mxu0 %v825
        %850 = vmatprep.subr.bf16.mxu0 0
        %851 = vmatpush1.bf16.msra.mxu0 %v827
        %852 = vmatprep.subr.bf16.mxu0 0
        %853 = vmatpush1.bf16.msra.mxu0 %v829
        %854 = vmatprep.subr.bf16.mxu0 0
        %855 = vmatpush1.bf16.msra.mxu0 %v831
        %856 = vmatprep.subr.bf16.mxu0 0
        %857 = vmatpush1.bf16.msra.mxu0 %v833
        %858 = vmatprep.subr.bf16.mxu0 0
        %859 = vmatpush1.bf16.msra.mxu0 %v835
        %860 = vmatprep.subr.bf16.mxu0 0
        %861 = vmatpush1.bf16.msra.mxu0 0
        %862 = vmatprep.subr.bf16.mxu0 0
        %863 = vmatpush1.bf16.msra.mxu0 0
        %864 = vmatprep.subr.bf16.mxu0 0
        %865 = vmatpush1.bf16.msra.mxu0 0
        %866 = vmatprep.subr.bf16.mxu0 0
        %867 = vmatpush1.bf16.msra.mxu0 0
        %868 = vmatprep.subr.bf16.mxu0 0
        %869 = vmatpush1.bf16.msra.mxu0 0
        %870 = vmatprep.subr.bf16.mxu0 0
        %871 = vmatpush1.bf16.msra.mxu0 0
        %872 = vmatprep.subr.bf16.mxu0 0
        %873 = vmatpush1.bf16.msra.mxu0 0
        %874 = vmatprep.subr.bf16.mxu0 0
        %875 = vmatpush1.bf16.msra.mxu0 0
        %876 = vmatprep.mubr.bf16.mxu0 0
        %877 = vmatmul.mubr.bf16.gmra.mrb[0].mxu0 %v811
        %v878 = vpop.f32.mrb[0].mxu0
        %v879 = vadd.f32 0.0, %v878
        %v880 = vpop.f32.mrb[0].mxu0
        %v881 = vpop.f32.mrb[0].mxu0
        %v882 = vpop.f32.mrb[0].mxu0
        %883 = vdwg.mxu0
        %v884 = vpack.c.bf16 %v879, %v879
        %vm885 = vcmask 125952
        %886 = vst.msk [vmem:[#allocation3] sm:$0xf] %vm885, %v884
        %v887 = vadd.f32 %v810, 0.0
        %v888 = vld [vmem:[#allocation2] sm:$0xff]
        %v889 = vld [vmem:[#allocation2 + $0x8] sm:$0xff]
        %v890 = vld [vmem:[#allocation2 + $0x10] sm:$0xff]
        %v891 = vld [vmem:[#allocation2 + $0x18] sm:$0xff]
        %v892 = vld [vmem:[#allocation2 + $0x20] sm:$0xff]
        %v893 = vld [vmem:[#allocation2 + $0x28] sm:$0xff]
        %v894 = vld [vmem:[#allocation2 + $0x30] sm:$0xff]
        %v895 = vld [vmem:[#allocation2 + $0x38] sm:$0xff]
        %897 = vrot.lane.b32.xlu0 %v719, 112
        %v898 = vpop.permute.xlu0 %897
        %907 = vrot.lane.b32.xlu0 %v888, 112
        %v908 = vpop.permute.xlu0 %907
        %909 = vrot.lane.b32.xlu0 %v889, 112
        %v910 = vpop.permute.xlu0 %909
        %911 = vrot.lane.b32.xlu0 %v890, 112
        %v912 = vpop.permute.xlu0 %911
        %913 = vrot.lane.b32.xlu0 %v891, 112
        %v914 = vpop.permute.xlu0 %913
        %915 = vrot.lane.b32.xlu0 %v892, 112
        %v916 = vpop.permute.xlu0 %915
        %917 = vrot.lane.b32.xlu0 %v893, 112
        %v918 = vpop.permute.xlu0 %917
        %919 = vrot.lane.b32.xlu0 %v894, 112
        %v920 = vpop.permute.xlu0 %919
        %921 = vrot.lane.b32.xlu0 %v895, 112
        %v922 = vpop.permute.xlu0 %921
        %v924 = vsel %vm734, %v898, 0
        %v927 = vsel %vm734, %v908, 0
        %v930 = vsel %vm734, %v910, 0
        %v933 = vsel %vm734, %v912, 0
        %v936 = vsel %vm734, %v914, 0
        %v939 = vsel %vm734, %v916, 0
        %v942 = vsel %vm734, %v918, 0
        %v945 = vsel %vm734, %v920, 0
        %v948 = vsel %vm734, %v922, 0
        %950 = vmatprep.subr.bf16.mxu0 0
        %951 = vmatpush1.bf16.xpose.msra.mxu0 %v927
        %952 = vmatprep.subr.bf16.mxu0 0
        %953 = vmatpush1.bf16.xpose.msra.mxu0 %v930
        %954 = vmatprep.subr.bf16.mxu0 0
        %955 = vmatpush1.bf16.xpose.msra.mxu0 %v933
        %956 = vmatprep.subr.bf16.mxu0 0
        %957 = vmatpush1.bf16.xpose.msra.mxu0 %v936
        %958 = vmatprep.subr.bf16.mxu0 0
        %959 = vmatpush1.bf16.xpose.msra.mxu0 %v939
        %960 = vmatprep.subr.bf16.mxu0 0
        %961 = vmatpush1.bf16.xpose.msra.mxu0 %v942
        %962 = vmatprep.subr.bf16.mxu0 0
        %963 = vmatpush1.bf16.xpose.msra.mxu0 %v945
        %964 = vmatprep.subr.bf16.mxu0 0
        %965 = vmatpush1.bf16.xpose.msra.mxu0 %v948
        %966 = vmatprep.subr.bf16.mxu0 0
        %967 = vmatpush1.bf16.xpose.msra.mxu0 0
        %968 = vmatprep.subr.bf16.mxu0 0
        %969 = vmatpush1.bf16.xpose.msra.mxu0 0
        %970 = vmatprep.subr.bf16.mxu0 0
        %971 = vmatpush1.bf16.xpose.msra.mxu0 0
        %972 = vmatprep.subr.bf16.mxu0 0
        %973 = vmatpush1.bf16.xpose.msra.mxu0 0
        %974 = vmatprep.subr.bf16.mxu0 0
        %975 = vmatpush1.bf16.xpose.msra.mxu0 0
        %976 = vmatprep.subr.bf16.mxu0 0
        %977 = vmatpush1.bf16.xpose.msra.mxu0 0
        %978 = vmatprep.subr.bf16.mxu0 0
        %979 = vmatpush1.bf16.xpose.msra.mxu0 0
        %980 = vmatprep.subr.bf16.mxu0 0
        %981 = vmatpush1.bf16.xpose.msra.mxu0 0
        %982 = vmatprep.mubr.bf16.mxu0 0
        %983 = vmatmul.mubr.bf16.gmra.mrb[0].mxu0 %v924
        %v984 = vpop.f32.mrb[0].mxu0
        %v985 = vadd.f32 %v732, %v984
        %v986 = vpop.f32.mrb[0].mxu0
        %v987 = vpop.f32.mrb[0].mxu0
        %v988 = vpop.f32.mrb[0].mxu0
        %989 = vdwg.mxu0
        %990 = vmax.xlane.f32.xlu0 %v985
        %v991 = vpop.xlane.xlu0 %990
        %v992 = vsub.f32 %v985, %v991
        %v993 = vmul.f32 %v992, 1.442695
        %v994 = vpow.pop %v993
        %995 = vadd.xlane.f32.xlu0 %v994
        %v996 = vpop.xlane.xlu0 %995
        %v997 = vrcp.pop %v996
        %v998 = vmul.f32 %v994, %v997
        %v999 = vpack.c.bf16 %v998, %v998
        %1000 = vrot.lane.b32.xlu0 %v888, 80
        %v1001 = vpop.permute.xlu0 %1000
        %1002 = vrot.lane.b32.xlu0 %v889, 80
        %v1003 = vpop.permute.xlu0 %1002
        %1004 = vrot.lane.b32.xlu0 %v890, 80
        %v1005 = vpop.permute.xlu0 %1004
        %1006 = vrot.lane.b32.xlu0 %v891, 80
        %v1007 = vpop.permute.xlu0 %1006
        %1008 = vrot.lane.b32.xlu0 %v892, 80
        %v1009 = vpop.permute.xlu0 %1008
        %1010 = vrot.lane.b32.xlu0 %v893, 80
        %v1011 = vpop.permute.xlu0 %1010
        %1012 = vrot.lane.b32.xlu0 %v894, 80
        %v1013 = vpop.permute.xlu0 %1012
        %1014 = vrot.lane.b32.xlu0 %v895, 80
        %v1015 = vpop.permute.xlu0 %1014
        %1024 = vmatprep.subr.bf16.mxu0 0
        %1025 = vmatpush1.bf16.msra.mxu0 %v1001
        %1026 = vmatprep.subr.bf16.mxu0 0
        %1027 = vmatpush1.bf16.msra.mxu0 %v1003
        %1028 = vmatprep.subr.bf16.mxu0 0
        %1029 = vmatpush1.bf16.msra.mxu0 %v1005
        %1030 = vmatprep.subr.bf16.mxu0 0
        %1031 = vmatpush1.bf16.msra.mxu0 %v1007
        %1032 = vmatprep.subr.bf16.mxu0 0
        %1033 = vmatpush1.bf16.msra.mxu0 %v1009
        %1034 = vmatprep.subr.bf16.mxu0 0
        %1035 = vmatpush1.bf16.msra.mxu0 %v1011
        %1036 = vmatprep.subr.bf16.mxu0 0
        %1037 = vmatpush1.bf16.msra.mxu0 %v1013
        %1038 = vmatprep.subr.bf16.mxu0 0
        %1039 = vmatpush1.bf16.msra.mxu0 %v1015
        %1040 = vmatprep.subr.bf16.mxu0 0
        %1041 = vmatpush1.bf16.msra.mxu0 0
        %1042 = vmatprep.subr.bf16.mxu0 0
        %1043 = vmatpush1.bf16.msra.mxu0 0
        %1044 = vmatprep.subr.bf16.mxu0 0
        %1045 = vmatpush1.bf16.msra.mxu0 0
        %1046 = vmatprep.subr.bf16.mxu0 0
        %1047 = vmatpush1.bf16.msra.mxu0 0
        %1048 = vmatprep.subr.bf16.mxu0 0
        %1049 = vmatpush1.bf16.msra.mxu0 0
        %1050 = vmatprep.subr.bf16.mxu0 0
        %1051 = vmatpush1.bf16.msra.mxu0 0
        %1052 = vmatprep.subr.bf16.mxu0 0
        %1053 = vmatpush1.bf16.msra.mxu0 0
        %1054 = vmatprep.subr.bf16.mxu0 0
        %1055 = vmatpush1.bf16.msra.mxu0 0
        %1056 = vmatprep.mubr.bf16.mxu0 0
        %1057 = vmatmul.mubr.bf16.gmra.mrb[0].mxu0 %v999
        %v1058 = vpop.f32.mrb[0].mxu0
        %v1059 = vadd.f32 0.0, %v1058
        %v1060 = vpop.f32.mrb[0].mxu0
        %v1061 = vpop.f32.mrb[0].mxu0
        %v1062 = vpop.f32.mrb[0].mxu0
        %1063 = vdwg.mxu0
        %v1064 = vpack.c.bf16 %v1059, %v1059
        %v1066 = vunpack.c.l.b16 %v1064
        %v1067 = vpack.c.b16 %v1066, %v1066
        %1068 = vrot.lane.b32.xlu0 %v1067, 16
        %v1069 = vpop.permute.xlu0 %1068
        %vm1071 = vcmask 257152
        %1072 = vst.msk [vmem:[#allocation3] sm:$0xf] %vm1071, %v1069
        %v1073 = vadd.f32 %v887, %v998
        %v1074 = vld [vmem:[#allocation3] sm:$0xf]
        %v1075 = vld [vmem:[%s7] sm:$0xf]
        %v1076 = vld [vmem:[%s7 + $0x4] sm:$0xf]
        %v1077 = vld [vmem:[%s7 + $0x8] sm:$0xf]
        %v1078 = vld [vmem:[%s7 + $0xc] sm:$0xf]
        %v1079 = vld [vmem:[%s8] sm:$0x1]
        %v1081 = vlaneseq
        %v1082 = vshrl.u32 %v1081, 7
        %v1083 = vsub.s32 0, %v1082
        %v1084 = vrot.slane %v1079, %v1083
        %v1090 = vunpack.c.l.b16 %v1075
        %v1091 = vunpack.c.l.b16 %v1076
        %v1092 = vunpack.c.l.b16 %v1077
        %v1093 = vunpack.c.l.b16 %v1078
        %v1094 = vpack.c.b16 %v1091, %v1090
        %v1095 = vpack.c.b16 %v1093, %v1092
        %v1099 = vsel %vm675, %v1074, 0
        %1101 = vmatprep.subr.bf16.mxu0 0
        %1102 = vmatpush1.bf16.msra.mxu0 %v1094
        %1103 = vmatprep.subr.bf16.mxu0 0
        %1104 = vmatpush1.bf16.msra.mxu0 %v1095
        %1105 = vmatprep.subr.bf16.mxu0 0
        %1106 = vmatpush1.bf16.msra.mxu0 0
        %1107 = vmatprep.subr.bf16.mxu0 0
        %1108 = vmatpush1.bf16.msra.mxu0 0
        %1109 = vmatprep.subr.bf16.mxu0 0
        %1110 = vmatpush1.bf16.msra.mxu0 0
        %1111 = vmatprep.subr.bf16.mxu0 0
        %1112 = vmatpush1.bf16.msra.mxu0 0
        %1113 = vmatprep.subr.bf16.mxu0 0
        %1114 = vmatpush1.bf16.msra.mxu0 0
        %1115 = vmatprep.subr.bf16.mxu0 0
        %1116 = vmatpush1.bf16.msra.mxu0 0
        %1117 = vmatprep.subr.bf16.mxu0 0
        %1118 = vmatpush1.bf16.msra.mxu0 0
        %1119 = vmatprep.subr.bf16.mxu0 0
        %1120 = vmatpush1.bf16.msra.mxu0 0
        %1121 = vmatprep.subr.bf16.mxu0 0
        %1122 = vmatpush1.bf16.msra.mxu0 0
        %1123 = vmatprep.subr.bf16.mxu0 0
        %1124 = vmatpush1.bf16.msra.mxu0 0
        %1125 = vmatprep.subr.bf16.mxu0 0
        %1126 = vmatpush1.bf16.msra.mxu0 0
        %1127 = vmatprep.subr.bf16.mxu0 0
        %1128 = vmatpush1.bf16.msra.mxu0 0
        %1129 = vmatprep.subr.bf16.mxu0 0
        %1130 = vmatpush1.bf16.msra.mxu0 0
        %1131 = vmatprep.subr.bf16.mxu0 0
        %1132 = vmatpush1.bf16.msra.mxu0 0
        %1133 = vmatprep.mubr.bf16.mxu0 0
        %1134 = vmatmul.mubr.bf16.gmra.mrb[0].mxu0 %v1099
        %v1135 = vpop.f32.mrb[0].mxu0
        %v1136 = vadd.f32 %v1084, %v1135
        %v1137 = vpop.f32.mrb[0].mxu0
        %v1138 = vpop.f32.mrb[0].mxu0
        %v1139 = vpop.f32.mrb[0].mxu0
        %1140 = vdwg.mxu0
        %1141 = vst.msk [vmem:[%s404] sm:$0xff] %vm675, %v1136
        %v1142 = vmul.f32 %v1073, 0.5
        %1143 = vst [vmem:[%s411] sm:$0xff] %v1142
        %s1144 = sand.u32 %s256, 1
        %s1145 = scalar_lea.sflag [#allocation5], %s1144
        %s1146 = sand.u32 %s256, 1
        %s1147 = smul.addr %s1146, 8
        %s1148 = scalar_lea.vmem [#allocation4], %s1147
        %s1149 = sand.u32 %s284, 1
        %s1150 = scalar_lea.sflag [#allocation7], %s1149
        %s1151 = sand.u32 %s284, 1
        %s1152 = smul.addr %s1151, 8
        %s1153 = scalar_lea.vmem [#allocation6], %s1152
        // Predicated region
        $region61: #{tpu_custom_call.1} parent=55 // pred_check
          %p1154 = pneg %p266
        $region62: #{tpu_custom_call.1} parent=55 // pred_check_branch
          %1156 = sbr.rel (%p1154) target = $region64
        $region63: #{tpu_custom_call.1} parent=55 // pred_region
          %s1158 = ssub.s32 128, 128
          %1159 = vsyncadd %s1145, %s1158
          %s1160 = sadd.s32 %s33, %s32
          %s1161 = smul.addr %s1160, 128
          %s1162 = scalar_lea.hbm %s9, %s1161
          %s1164 = sshll.u32 %s1148, 4
          %s1165 = int_to_ptr.vmem [resolvable:$true] %s1164
          %1167 = dma.vmem_to_hbm [thread:$0]  %s1165, 128, %s1162, %s1145
        $region64: #{tpu_custom_call.1} parent=55 // pred_fallthru
          _
        // Predicated region
        $region65: #{tpu_custom_call.1} parent=55 // pred_check
          %p1168 = pneg %p294
        $region66: #{tpu_custom_call.1} parent=55 // pred_check_branch
          %1170 = sbr.rel (%p1168) target = $region68
        $region67: #{tpu_custom_call.1} parent=55 // pred_region
          %s1172 = ssub.s32 128, 128
          %1173 = vsyncadd %s1150, %s1172
          %s1174 = sadd.s32 %s33, %s32
          %s1175 = smul.addr %s1174, 128
          %s1176 = scalar_lea.hbm %s10, %s1175
          %s1178 = sshll.u32 %s1153, 4
          %s1179 = int_to_ptr.vmem [resolvable:$true] %s1178
          %1181 = dma.vmem_to_hbm [thread:$0]  %s1179, 128, %s1176, %s1150
        $region68: #{tpu_custom_call.1} parent=55 // pred_fallthru
          _
      $region56: #{tpu_custom_call.1} parent=5 // pred_fallthru
        _
      %p1182 = scmp.le.s32.totalorder 2, %s23
      // Predicated region
      $region69: #{tpu_custom_call.1} parent=5 // pred_check
        %p1183 = pneg %p1182
      $region70: #{tpu_custom_call.1} parent=5 // pred_check_branch
        %1185 = sbr.rel (%p1183) target = $region72
      $region71: #{tpu_custom_call.1} parent=5 // pred_region
        %s1186 = ssub.s32 %s23, 2
        // Predicated region
        $region73: #{tpu_custom_call.1} parent=71 // pred_check
          %p1187 = pneg %p272
        $region74: #{tpu_custom_call.1} parent=71 // pred_check_branch
          %1189 = sbr.rel (%p1187) target = $region76
        $region75: #{tpu_custom_call.1} parent=71 // pred_region
          %s1190 = sand.u32 %s257, 1
          %s1191 = scalar_lea.sflag [#allocation5], %s1190
          %s1192 = sand.u32 %s257, 1
          %s1193 = smul.addr %s1192, 8
          %s1194 = scalar_lea.vmem [#allocation4], %s1193
          %1195 = dma.done %s1191, 128
        $region76: #{tpu_custom_call.1} parent=71 // pred_fallthru
          _
        // Predicated region
        $region77: #{tpu_custom_call.1} parent=71 // pred_check
          %p1196 = pneg %p300
        $region78: #{tpu_custom_call.1} parent=71 // pred_check_branch
          %1198 = sbr.rel (%p1196) target = $region80
        $region79: #{tpu_custom_call.1} parent=71 // pred_region
          %s1199 = sand.u32 %s285, 1
          %s1200 = scalar_lea.sflag [#allocation7], %s1199
          %s1201 = sand.u32 %s285, 1
          %s1202 = smul.addr %s1201, 8
          %s1203 = scalar_lea.vmem [#allocation6], %s1202
          %1204 = dma.done %s1200, 128
        $region80: #{tpu_custom_call.1} parent=71 // pred_fallthru
          _
      $region72: #{tpu_custom_call.1} parent=5 // pred_fallthru
        _
    $region6: #{tpu_custom_call.1} parent=1 // loop_footer
      %s27 = sadd.s32 1, %s23
    $region7: #{tpu_custom_call.1} parent=1 // loop_footer_branch
      %22 = sbr.rel target = $region3
    $region8: #{tpu_custom_call.1} parent=1 // loop_exit
      _
    %1205 = vsyncpa [#allocation5], 1
    %s1206 = scalar_lea.sflag [#allocation5], 1
    %1207 = vsyncpa %s1206, 1
    %1208 = vsyncpa [#allocation7], 1
    %s1209 = scalar_lea.sflag [#allocation7], 1
    %1210 = vsyncpa %s1209, 1

// kernel: tpu_custom_call.1
$region0: #{tpu_custom_call.1}
  #allocation0 [shape = 'u32[]', space=smem, size = 0x4, offset = 0x4, fixed_abs, tag = 'smem constant byte address 0x4 - core index']
  #allocation1 [shape = 'u32[144,128]{1,0:T(1,128)}', space=vmem, size = 0x12000, scoped, tag = 'internal scratch']
  #allocation2 [shape = 'bf16[128,64]{1,0:T(16,128)(2,1)}', space=vmem, size = 0x8000, scoped, tag = 'scratch operand']
  #allocation3 [shape = 'bf16[8,32]{1,0:T(8,128)(2,1)}', space=vmem, size = 0x800, scoped, tag = 'scratch operand']
  %s0 = inlined_call_operand.vmem [shape: bf16[2,8,32], index: 0, kind: input, shape index: {}]
  %s1 = inlined_call_operand.vmem [shape: bf16[2,128,32], index: 1, kind: input, shape index: {}]
  %s2 = inlined_call_operand.vmem [shape: f32[2,1,128], index: 2, kind: input, shape index: {}]
  %s3 = inlined_call_operand.vmem [shape: bf16[32,32], index: 3, kind: input, shape index: {}]
  %s4 = inlined_call_operand.vmem [shape: f32[1,32], index: 4, kind: input, shape index: {}]
  %s5 = inlined_call_operand.vmem [shape: bf16[32,64], index: 5, kind: input, shape index: {}]
  %s6 = inlined_call_operand.vmem [shape: f32[1,64], index: 6, kind: input, shape index: {}]
  %s7 = inlined_call_operand.vmem [shape: bf16[32,32], index: 7, kind: input, shape index: {}]
  %s8 = inlined_call_operand.vmem [shape: f32[1,32], index: 8, kind: input, shape index: {}]
  %s9 = inlined_call_operand.hbm [shape: f32[2,8,32], index: 9, kind: output, shape index: {0}]
  %s10 = inlined_call_operand.hbm [shape: f32[2,8,128], index: 10, kind: output, shape index: {1}]
  %11 = xla_tuple %s9, %s10
  %s12 = sld [smem:[#allocation0]]
  $region81: #{tpu_custom_call.1} parent=0
    _
  %s14 = ssub.s32 1, %s12
  %s15 = scalar_select 0, %s14, %s12
  $region1: #{tpu_custom_call.1} parent=0
    #allocation4 [shape = 'u8[8192]{0}', space=vmem, size = 0x2000, scoped, tag = 'output window, operand 0']
    #allocation5 [shape = 's32[2]{0}', space=sflag, size = 0x8, scoped, tag = 'scoped memory for tpu_custom_call.1']
    #allocation6 [shape = 'u8[8192]{0}', space=vmem, size = 0x2000, scoped, tag = 'output window, operand 1']
    #allocation7 [shape = 's32[2]{0}', space=sflag, size = 0x8, scoped, tag = 'scoped memory for tpu_custom_call.1']
    %16 = vsyncpa [#allocation5], 0
    %s17 = scalar_lea.sflag [#allocation5], 1
    %18 = vsyncpa %s17, 0
    %19 = vsyncpa [#allocation7], 0
    %s20 = scalar_lea.sflag [#allocation7], 1
    %21 = vsyncpa %s20, 0
    loop: start=0, step=1, limit=4
    $region2: #{tpu_custom_call.1} parent=1 // loop_pre_header
      _
    $region3: #{tpu_custom_call.1} parent=1 // loop_header
      %s23 = sphi 0, %s27
      %p24 = scmp.ge.s32.totalorder %s23, 4
      %s30 = sphi 0, %s42
      %s31 = sphi 0, %s38
      %s32 = sphi 0, %s30
      %s33 = sphi 0, %s31
      %s34 = sphi 0, %s32
      %s35 = sphi 0, %s33
      %s47 = sphi 0, %s49
      %s50 = sphi 0, %s47
      %s51 = sphi 0, %s50
      %s67 = sphi 0, %s51
      %s73 = sphi 0, %s75
      %s76 = sphi 0, %s73
      %s77 = sphi 0, %s76
      %s93 = sphi 0, %s77
      %s99 = sphi 0, %s101
      %s102 = sphi 0, %s99
      %s103 = sphi 0, %s102
      %s119 = sphi 0, %s103
      %s123 = sphi 0, %s123
      %s125 = sphi 0, %s123
      %s126 = sphi 0, %s125
      %s140 = sphi 0, %s126
      %s144 = sphi 0, %s144
      %s146 = sphi 0, %s144
      %s147 = sphi 0, %s146
      %s161 = sphi 0, %s147
      %s165 = sphi 0, %s165
      %s167 = sphi 0, %s165
      %s168 = sphi 0, %s167
      %s182 = sphi 0, %s168
      %s186 = sphi 0, %s186
      %s188 = sphi 0, %s186
      %s189 = sphi 0, %s188
      %s203 = sphi 0, %s189
      %s207 = sphi 0, %s207
      %s209 = sphi 0, %s207
      %s210 = sphi 0, %s209
      %s224 = sphi 0, %s210
      %s228 = sphi 0, %s228
      %s230 = sphi 0, %s228
      %s231 = sphi 0, %s230
      %s245 = sphi 0, %s231
      %s253 = sphi 0, %s255
      %s256 = sphi 0, %s253
      %s257 = sphi 0, %s256
      %s273 = sphi 0, %s257
      %s281 = sphi 0, %s283
      %s284 = sphi 0, %s281
      %s285 = sphi 0, %s284
      %s301 = sphi 0, %s285
    $region4: #{tpu_custom_call.1} parent=1 // loop_header_branch
      %26 = sbr.rel (%p24) target = $region8
    $region5: #{tpu_custom_call.1} parent=1 // loop_body
      %s28 = ssub.s32 %s23, 1
      %s29 = ssub.s32 %s23, 2
      %s36 = sadd.s32 1, %s31
      %p37 = scmp.ge.s32.totalorder %s36, 1
      %s38 = scalar_select %p37, 0, %s36
      %s39 = sadd.s32 1, %s30
      %s40 = scalar_select %p37, %s39, %s30
      %p41 = scmp.ge.s32.totalorder %s40, 2
      %s42 = scalar_select %p41, 0, %s40
      %s43 = ssub.s32 %s30, %s42
      %s44 = ssub.s32 %s31, %s38
      %s45 = sor.u32 %s43, %s44
      %p46 = scmp.eq.s32.totalorder %s45, 0
      %s48 = sadd.s32 %s47, 1
      %s49 = scalar_select %p46, %s47, %s48
      %p52 = pneg %p46
      %p53 = scmp.eq.s32.totalorder %s23, 1
      %p54 = por %p52, %p53
      %p55 = scmp.ne.s32.totalorder %s47, %s50
      %p56 = scmp.eq.s32.totalorder %s23, 0
      %p57 = por %p55, %p56
      %p58 = scmp.ne.s32.totalorder %s47, %s50
      %p59 = scmp.eq.s32.totalorder %s28, 1
      %p60 = por %p58, %p59
      %p61 = scmp.ne.s32.totalorder %s50, %s51
      %p62 = scmp.eq.s32.totalorder %s28, 0
      %p63 = por %p61, %p62
      %p64 = scmp.ne.s32.totalorder %s50, %s51
      %p65 = scmp.eq.s32.totalorder %s29, 1
      %p66 = por %p64, %p65
      %p68 = scmp.ne.s32.totalorder %s51, %s67
      %p69 = scmp.eq.s32.totalorder %s29, 0
      %p70 = por %p68, %p69
      %s71 = ssub.s32 %s30, %s42
      %p72 = scmp.eq.s32.totalorder %s71, 0
      %s74 = sadd.s32 %s73, 1
      %s75 = scalar_select %p72, %s73, %s74
      %p78 = pneg %p72
      %p79 = scmp.eq.s32.totalorder %s23, 1
      %p80 = por %p78, %p79
      %p81 = scmp.ne.s32.totalorder %s73, %s76
      %p82 = scmp.eq.s32.totalorder %s23, 0
      %p83 = por %p81, %p82
      %p84 = scmp.ne.s32.totalorder %s73, %s76
      %p85 = scmp.eq.s32.totalorder %s28, 1
      %p86 = por %p84, %p85
      %p87 = scmp.ne.s32.totalorder %s76, %s77
      %p88 = scmp.eq.s32.totalorder %s28, 0
      %p89 = por %p87, %p88
      %p90 = scmp.ne.s32.totalorder %s76, %s77
      %p91 = scmp.eq.s32.totalorder %s29, 1
      %p92 = por %p90, %p91
      %p94 = scmp.ne.s32.totalorder %s77, %s93
      %p95 = scmp.eq.s32.totalorder %s29, 0
      %p96 = por %p94, %p95
      %s97 = ssub.s32 %s30, %s42
      %p98 = scmp.eq.s32.totalorder %s97, 0
      %s100 = sadd.s32 %s99, 1
      %s101 = scalar_select %p98, %s99, %s100
      %p104 = pneg %p98
      %p105 = scmp.eq.s32.totalorder %s23, 1
      %p106 = por %p104, %p105
      %p107 = scmp.ne.s32.totalorder %s99, %s102
      %p108 = scmp.eq.s32.totalorder %s23, 0
      %p109 = por %p107, %p108
      %p110 = scmp.ne.s32.totalorder %s99, %s102
      %p111 = scmp.eq.s32.totalorder %s28, 1
      %p112 = por %p110, %p111
      %p113 = scmp.ne.s32.totalorder %s102, %s103
      %p114 = scmp.eq.s32.totalorder %s28, 0
      %p115 = por %p113, %p114
      %p116 = scmp.ne.s32.totalorder %s102, %s103
      %p117 = scmp.eq.s32.totalorder %s29, 1
      %p118 = por %p116, %p117
      %p120 = scmp.ne.s32.totalorder %s103, %s119
      %p121 = scmp.eq.s32.totalorder %s29, 0
      %p122 = por %p120, %p121
      %s124 = sadd.s32 %s123, 1
      %p127 = scmp.eq.s32.totalorder %s23, 1
      %p128 = scmp.ne.s32.totalorder %s123, %s125
      %p129 = scmp.eq.s32.totalorder %s23, 0
      %p130 = por %p128, %p129
      %p131 = scmp.ne.s32.totalorder %s123, %s125
      %p132 = scmp.eq.s32.totalorder %s28, 1
      %p133 = por %p131, %p132
      %p134 = scmp.ne.s32.totalorder %s125, %s126
      %p135 = scmp.eq.s32.totalorder %s28, 0
      %p136 = por %p134, %p135
      %p137 = scmp.ne.s32.totalorder %s125, %s126
      %p138 = scmp.eq.s32.totalorder %s29, 1
      %p139 = por %p137, %p138
      %p141 = scmp.ne.s32.totalorder %s126, %s140
      %p142 = scmp.eq.s32.totalorder %s29, 0
      %p143 = por %p141, %p142
      %s145 = sadd.s32 %s144, 1
      %p148 = scmp.eq.s32.totalorder %s23, 1
      %p149 = scmp.ne.s32.totalorder %s144, %s146
      %p150 = scmp.eq.s32.totalorder %s23, 0
      %p151 = por %p149, %p150
      %p152 = scmp.ne.s32.totalorder %s144, %s146
      %p153 = scmp.eq.s32.totalorder %s28, 1
      %p154 = por %p152, %p153
      %p155 = scmp.ne.s32.totalorder %s146, %s147
      %p156 = scmp.eq.s32.totalorder %s28, 0
      %p157 = por %p155, %p156
      %p158 = scmp.ne.s32.totalorder %s146, %s147
      %p159 = scmp.eq.s32.totalorder %s29, 1
      %p160 = por %p158, %p159
      %p162 = scmp.ne.s32.totalorder %s147, %s161
      %p163 = scmp.eq.s32.totalorder %s29, 0
      %p164 = por %p162, %p163
      %s166 = sadd.s32 %s165, 1
      %p169 = scmp.eq.s32.totalorder %s23, 1
      %p170 = scmp.ne.s32.totalorder %s165, %s167
      %p171 = scmp.eq.s32.totalorder %s23, 0
      %p172 = por %p170, %p171
      %p173 = scmp.ne.s32.totalorder %s165, %s167
      %p174 = scmp.eq.s32.totalorder %s28, 1
      %p175 = por %p173, %p174
      %p176 = scmp.ne.s32.totalorder %s167, %s168
      %p177 = scmp.eq.s32.totalorder %s28, 0
      %p178 = por %p176, %p177
      %p179 = scmp.ne.s32.totalorder %s167, %s168
      %p180 = scmp.eq.s32.totalorder %s29, 1
      %p181 = por %p179, %p180
      %p183 = scmp.ne.s32.totalorder %s168, %s182
      %p184 = scmp.eq.s32.totalorder %s29, 0
      %p185 = por %p183, %p184
      %s187 = sadd.s32 %s186, 1
      %p190 = scmp.eq.s32.totalorder %s23, 1
      %p191 = scmp.ne.s32.totalorder %s186, %s188
      %p192 = scmp.eq.s32.totalorder %s23, 0
      %p193 = por %p191, %p192
      %p194 = scmp.ne.s32.totalorder %s186, %s188
      %p195 = scmp.eq.s32.totalorder %s28, 1
      %p196 = por %p194, %p195
      %p197 = scmp.ne.s32.totalorder %s188, %s189
      %p198 = scmp.eq.s32.totalorder %s28, 0
      %p199 = por %p197, %p198
      %p200 = scmp.ne.s32.totalorder %s188, %s189
      %p201 = scmp.eq.s32.totalorder %s29, 1
      %p202 = por %p200, %p201
      %p204 = scmp.ne.s32.totalorder %s189, %s203
      %p205 = scmp.eq.s32.totalorder %s29, 0
      %p206 = por %p204, %p205
      %s208 = sadd.s32 %s207, 1
      %p211 = scmp.eq.s32.totalorder %s23, 1
      %p212 = scmp.ne.s32.totalorder %s207, %s209
      %p213 = scmp.eq.s32.totalorder %s23, 0
      %p214 = por %p212, %p213
      %p215 = scmp.ne.s32.totalorder %s207, %s209
      %p216 = scmp.eq.s32.totalorder %s28, 1
      %p217 = por %p215, %p216
      %p218 = scmp.ne.s32.totalorder %s209, %s210
      %p219 = scmp.eq.s32.totalorder %s28, 0
      %p220 = por %p218, %p219
      %p221 = scmp.ne.s32.totalorder %s209, %s210
      %p222 = scmp.eq.s32.totalorder %s29, 1
      %p223 = por %p221, %p222
      %p225 = scmp.ne.s32.totalorder %s210, %s224
      %p226 = scmp.eq.s32.totalorder %s29, 0
      %p227 = por %p225, %p226
      %s229 = sadd.s32 %s228, 1
      %p232 = scmp.eq.s32.totalorder %s23, 1
      %p233 = scmp.ne.s32.totalorder %s228, %s230
      %p234 = scmp.eq.s32.totalorder %s23, 0
      %p235 = por %p233, %p234
      %p236 = scmp.ne.s32.totalorder %s228, %s230
      %p237 = scmp.eq.s32.totalorder %s28, 1
      %p238 = por %p236, %p237
      %p239 = scmp.ne.s32.totalorder %s230, %s231
      %p240 = scmp.eq.s32.totalorder %s28, 0
      %p241 = por %p239, %p240
      %p242 = scmp.ne.s32.totalorder %s230, %s231
      %p243 = scmp.eq.s32.totalorder %s29, 1
      %p244 = por %p242, %p243
      %p246 = scmp.ne.s32.totalorder %s231, %s245
      %p247 = scmp.eq.s32.totalorder %s29, 0
      %p248 = por %p246, %p247
      %s249 = ssub.s32 %s30, %s42
      %s250 = ssub.s32 %s31, %s38
      %s251 = sor.u32 %s249, %s250
      %p252 = scmp.eq.s32.totalorder %s251, 0
      %s254 = sadd.s32 %s253, 1
      %s255 = scalar_select %p252, %s253, %s254
      %p258 = pneg %p252
      %p259 = scmp.eq.s32.totalorder %s23, 1
      %p260 = por %p258, %p259
      %p261 = scmp.ne.s32.totalorder %s253, %s256
      %p262 = scmp.eq.s32.totalorder %s23, 0
      %p263 = por %p261, %p262
      %p264 = scmp.ne.s32.totalorder %s253, %s256
      %p265 = scmp.eq.s32.totalorder %s28, 1
      %p266 = por %p264, %p265
      %p267 = scmp.ne.s32.totalorder %s256, %s257
      %p268 = scmp.eq.s32.totalorder %s28, 0
      %p269 = por %p267, %p268
      %p270 = scmp.ne.s32.totalorder %s256, %s257
      %p271 = scmp.eq.s32.totalorder %s29, 1
      %p272 = por %p270, %p271
      %p274 = scmp.ne.s32.totalorder %s257, %s273
      %p275 = scmp.eq.s32.totalorder %s29, 0
      %p276 = por %p274, %p275
      %s277 = ssub.s32 %s30, %s42
      %s278 = ssub.s32 %s31, %s38
      %s279 = sor.u32 %s277, %s278
      %p280 = scmp.eq.s32.totalorder %s279, 0
      %s282 = sadd.s32 %s281, 1
      %s283 = scalar_select %p280, %s281, %s282
      %p286 = pneg %p280
      %p287 = scmp.eq.s32.totalorder %s23, 1
      %p288 = por %p286, %p287
      %p289 = scmp.ne.s32.totalorder %s281, %s284
      %p290 = scmp.eq.s32.totalorder %s23, 0
      %p291 = por %p289, %p290
      %p292 = scmp.ne.s32.totalorder %s281, %s284
      %p293 = scmp.eq.s32.totalorder %s28, 1
      %p294 = por %p292, %p293
      %p295 = scmp.ne.s32.totalorder %s284, %s285
      %p296 = scmp.eq.s32.totalorder %s28, 0
      %p297 = por %p295, %p296
      %p298 = scmp.ne.s32.totalorder %s284, %s285
      %p299 = scmp.eq.s32.totalorder %s29, 1
      %p300 = por %p298, %p299
      %p302 = scmp.ne.s32.totalorder %s285, %s301
      %p303 = scmp.eq.s32.totalorder %s29, 0
      %p304 = por %p302, %p303
      %p305 = scmp.le.s32.totalorder 1, %s23
      %p306 = scmp.lt.s32.totalorder %s23, 3
      %p307 = pnand %p305, %p306
      %p308 = pneg %p307
      // Predicated region
      $region9: #{tpu_custom_call.1} parent=5 // pred_check
        _
      $region10: #{tpu_custom_call.1} parent=5 // pred_check_branch
        %310 = sbr.rel (%p307) target = $region12
      $region11: #{tpu_custom_call.1} parent=5 // pred_region
        %s311 = ssub.s32 %s23, 1
        // Predicated region
        $region13: #{tpu_custom_call.1} parent=11 // pred_check
          %p312 = pneg %p136
        $region14: #{tpu_custom_call.1} parent=11 // pred_check_branch
          %314 = sbr.rel (%p312) target = $region16
        $region15: #{tpu_custom_call.1} parent=11 // pred_region
          _
        $region16: #{tpu_custom_call.1} parent=11 // pred_fallthru
          _
        // Predicated region
        $region17: #{tpu_custom_call.1} parent=11 // pred_check
          %p315 = pneg %p157
        $region18: #{tpu_custom_call.1} parent=11 // pred_check_branch
          %317 = sbr.rel (%p315) target = $region20
        $region19: #{tpu_custom_call.1} parent=11 // pred_region
          _
        $region20: #{tpu_custom_call.1} parent=11 // pred_fallthru
          _
        // Predicated region
        $region21: #{tpu_custom_call.1} parent=11 // pred_check
          %p318 = pneg %p178
        $region22: #{tpu_custom_call.1} parent=11 // pred_check_branch
          %320 = sbr.rel (%p318) target = $region24
        $region23: #{tpu_custom_call.1} parent=11 // pred_region
          _
        $region24: #{tpu_custom_call.1} parent=11 // pred_fallthru
          _
        // Predicated region
        $region25: #{tpu_custom_call.1} parent=11 // pred_check
          %p321 = pneg %p199
        $region26: #{tpu_custom_call.1} parent=11 // pred_check_branch
          %323 = sbr.rel (%p321) target = $region28
        $region27: #{tpu_custom_call.1} parent=11 // pred_region
          _
        $region28: #{tpu_custom_call.1} parent=11 // pred_fallthru
          _
        // Predicated region
        $region29: #{tpu_custom_call.1} parent=11 // pred_check
          %p324 = pneg %p220
        $region30: #{tpu_custom_call.1} parent=11 // pred_check_branch
          %326 = sbr.rel (%p324) target = $region32
        $region31: #{tpu_custom_call.1} parent=11 // pred_region
          _
        $region32: #{tpu_custom_call.1} parent=11 // pred_fallthru
          _
        // Predicated region
        $region33: #{tpu_custom_call.1} parent=11 // pred_check
          %p327 = pneg %p241
        $region34: #{tpu_custom_call.1} parent=11 // pred_check_branch
          %329 = sbr.rel (%p327) target = $region36
        $region35: #{tpu_custom_call.1} parent=11 // pred_region
          _
        $region36: #{tpu_custom_call.1} parent=11 // pred_fallthru
          _
      $region12: #{tpu_custom_call.1} parent=5 // pred_fallthru
        _
      %p330 = scmp.lt.s32.totalorder %s23, 2
      // Predicated region
      $region37: #{tpu_custom_call.1} parent=5 // pred_check
        %p331 = pneg %p330
      $region38: #{tpu_custom_call.1} parent=5 // pred_check_branch
        %333 = sbr.rel (%p331) target = $region40
      $region39: #{tpu_custom_call.1} parent=5 // pred_region
        // Predicated region
        $region41: #{tpu_custom_call.1} parent=39 // pred_check
          %p334 = pneg %p57
        $region42: #{tpu_custom_call.1} parent=39 // pred_check_branch
          %336 = sbr.rel (%p334) target = $region44
        $region43: #{tpu_custom_call.1} parent=39 // pred_region
          %p337 = scmp.lt.s32.totalorder %s30, 1
          %s338 = scalar_select %p337, %s30, 1
          %p339 = scmp.lt.s32.totalorder %s31, 0
          %s340 = scalar_select %p339, %s31, 0
          %s341 = sadd.s32 %s340, %s338
          %s342 = smul.addr %s341, 4
          %s343 = scalar_lea.vmem %s0, %s342
        $region44: #{tpu_custom_call.1} parent=39 // pred_fallthru
          _
        // Predicated region
        $region45: #{tpu_custom_call.1} parent=39 // pred_check
          %p344 = pneg %p83
        $region46: #{tpu_custom_call.1} parent=39 // pred_check_branch
          %346 = sbr.rel (%p344) target = $region48
        $region47: #{tpu_custom_call.1} parent=39 // pred_region
          %p347 = scmp.lt.s32.totalorder %s30, 1
          %s348 = scalar_select %p347, %s30, 1
          %s349 = smul.addr %s348, 16
          %s350 = smul.addr %s349, 4
          %s351 = scalar_lea.vmem %s1, %s350
        $region48: #{tpu_custom_call.1} parent=39 // pred_fallthru
          _
        // Predicated region
        $region49: #{tpu_custom_call.1} parent=39 // pred_check
          %p352 = pneg %p109
        $region50: #{tpu_custom_call.1} parent=39 // pred_check_branch
          %354 = sbr.rel (%p352) target = $region52
        $region51: #{tpu_custom_call.1} parent=39 // pred_region
          %p355 = scmp.lt.s32.totalorder %s30, 1
          %s356 = scalar_select %p355, %s30, 1
          %s357 = scalar_lea.vmem %s2, %s356
        $region52: #{tpu_custom_call.1} parent=39 // pred_fallthru
          _
      $region40: #{tpu_custom_call.1} parent=5 // pred_fallthru
        _
      %p358 = scmp.le.s32.totalorder 1, %s23
      %p359 = scmp.lt.s32.totalorder %s23, 3
      %p360 = pnand %p358, %p359
      %p361 = pneg %p360
      // Predicated region
      $region53: #{tpu_custom_call.1} parent=5 // pred_check
        _
      $region54: #{tpu_custom_call.1} parent=5 // pred_check_branch
        %363 = sbr.rel (%p360) target = $region56
      $region55: #{tpu_custom_call.1} parent=5 // pred_region
        %s364 = ssub.s32 %s23, 1
        %p365 = scmp.lt.s32.totalorder %s32, 1
        %s366 = scalar_select %p365, %s32, 1
        %p367 = scmp.lt.s32.totalorder %s33, 0
        %s368 = scalar_select %p367, %s33, 0
        %s369 = sadd.s32 %s368, %s366
        %s370 = smul.addr %s369, 4
        %s371 = scalar_lea.vmem %s0, %s370
        %p372 = pneg %p63
        %p373 = pneg %p60
        %p374 = scmp.lt.s32.totalorder %s32, 1
        %s375 = scalar_select %p374, %s32, 1
        %s376 = smul.addr %s375, 16
        %s377 = smul.addr %s376, 4
        %s378 = scalar_lea.vmem %s1, %s377
        %p379 = pneg %p89
        %p380 = pneg %p86
        %p381 = scmp.lt.s32.totalorder %s32, 1
        %s382 = scalar_select %p381, %s32, 1
        %s383 = scalar_lea.vmem %s2, %s382
        %p384 = pneg %p115
        %p385 = pneg %p112
        %p386 = pneg %p136
        %p387 = pneg %p133
        %p388 = pneg %p157
        %p389 = pneg %p154
        %p390 = pneg %p178
        %p391 = pneg %p175
        %p392 = pneg %p199
        %p393 = pneg %p196
        %p394 = pneg %p220
        %p395 = pneg %p217
        %p396 = pneg %p241
        %p397 = pneg %p238
        %p398 = pneg %p269
        %p399 = pneg %p266
        %s400 = sand.u32 %s256, 1
        %s401 = scalar_lea.sflag [#allocation5], %s400
        %s402 = sand.u32 %s256, 1
        %s403 = smul.addr %s402, 8
        %s404 = scalar_lea.vmem [#allocation4], %s403
        %p405 = pneg %p297
        %p406 = pneg %p294
        %s407 = sand.u32 %s284, 1
        %s408 = scalar_lea.sflag [#allocation7], %s407
        %s409 = sand.u32 %s284, 1
        %s410 = smul.addr %s409, 8
        %s411 = scalar_lea.vmem [#allocation6], %s410
        %p412 = scmp.lt.s32.totalorder %s32, 1
        %s413 = scalar_select %p412, %s32, 1
        %p414 = scmp.lt.s32.totalorder %s33, 0
        %s415 = scalar_select %p414, %s33, 0
        %s416 = sadd.s32 %s415, %s413
        %s417 = smul.addr %s416, 4
        %s418 = scalar_lea.vmem %s0, %s417
        %p419 = scmp.lt.s32.totalorder %s32, 1
        %s420 = scalar_select %p419, %s32, 1
        %s421 = smul.addr %s420, 16
        %s422 = smul.addr %s421, 4
        %s423 = scalar_lea.vmem %s1, %s422
        %p424 = scmp.lt.s32.totalorder %s32, 1
        %s425 = scalar_select %p424, %s32, 1
        %s426 = scalar_lea.vmem %s2, %s425
        %p428 = scmp.eq.s32.totalorder %s33, 0
        // Predicated region
        $region57: #{tpu_custom_call.1} parent=55 // pred_check
          %p429 = pneg %p428
        $region58: #{tpu_custom_call.1} parent=55 // pred_check_branch
          %431 = sbr.rel (%p429) target = $region60
        $region59: #{tpu_custom_call.1} parent=55 // pred_region
          %v432 = vld [vmem:[%s423] sm:$0xf]
          %v433 = vld [vmem:[%s423 + $0x4] sm:$0xf]
          %v434 = vld [vmem:[%s423 + $0x8] sm:$0xf]
          %v435 = vld [vmem:[%s423 + $0xc] sm:$0xf]
          %v436 = vld [vmem:[%s423 + $0x10] sm:$0xf]
          %v437 = vld [vmem:[%s423 + $0x14] sm:$0xf]
          %v438 = vld [vmem:[%s423 + $0x18] sm:$0xf]
          %v439 = vld [vmem:[%s423 + $0x1c] sm:$0xf]
          %v440 = vld [vmem:[%s423 + $0x20] sm:$0xf]
          %v441 = vld [vmem:[%s423 + $0x24] sm:$0xf]
          %v442 = vld [vmem:[%s423 + $0x28] sm:$0xf]
          %v443 = vld [vmem:[%s423 + $0x2c] sm:$0xf]
          %v444 = vld [vmem:[%s423 + $0x30] sm:$0xf]
          %v445 = vld [vmem:[%s423 + $0x34] sm:$0xf]
          %v446 = vld [vmem:[%s423 + $0x38] sm:$0xf]
          %v447 = vld [vmem:[%s423 + $0x3c] sm:$0xf]
          %v448 = vld [vmem:[%s5] sm:$0xf]
          %v449 = vld [vmem:[%s5 + $0x4] sm:$0xf]
          %v450 = vld [vmem:[%s5 + $0x8] sm:$0xf]
          %v451 = vld [vmem:[%s5 + $0xc] sm:$0xf]
          %v452 = vld [vmem:[%s6] sm:$0x1]
          %v454 = vlaneseq
          %v455 = vshrl.u32 %v454, 7
          %v456 = vsub.s32 0, %v455
          %v457 = vrot.slane %v452, %v456
          %v475 = vunpack.c.l.b16 %v432
          %v476 = vunpack.c.l.b16 %v433
          %v477 = vunpack.c.l.b16 %v434
          %v478 = vunpack.c.l.b16 %v435
          %v479 = vunpack.c.l.b16 %v436
          %v480 = vunpack.c.l.b16 %v437
          %v481 = vunpack.c.l.b16 %v438
          %v482 = vunpack.c.l.b16 %v439
          %v483 = vunpack.c.l.b16 %v440
          %v484 = vunpack.c.l.b16 %v441
          %v485 = vunpack.c.l.b16 %v442
          %v486 = vunpack.c.l.b16 %v443
          %v487 = vunpack.c.l.b16 %v444
          %v488 = vunpack.c.l.b16 %v445
          %v489 = vunpack.c.l.b16 %v446
          %v490 = vunpack.c.l.b16 %v447
          %v491 = vpack.c.b16 %v476, %v475
          %v492 = vpack.c.b16 %v478, %v477
          %v493 = vpack.c.b16 %v480, %v479
          %v494 = vpack.c.b16 %v482, %v481
          %v495 = vpack.c.b16 %v484, %v483
          %v496 = vpack.c.b16 %v486, %v485
          %v497 = vpack.c.b16 %v488, %v487
          %v498 = vpack.c.b16 %v490, %v489
          %v503 = vunpack.c.l.b16 %v448
          %v504 = vunpack.c.l.b16 %v449
          %v505 = vunpack.c.l.b16 %v450
          %v506 = vunpack.c.l.b16 %v451
          %v507 = vpack.c.b16 %v504, %v503
          %v508 = vpack.c.b16 %v506, %v505
          %vm511 = vcmask 261120
          %v513 = vsel %vm511, %v491, 0
          %v516 = vsel %vm511, %v492, 0
          %v519 = vsel %vm511, %v493, 0
          %v522 = vsel %vm511, %v494, 0
          %v525 = vsel %vm511, %v495, 0
          %v528 = vsel %vm511, %v496, 0
          %v531 = vsel %vm511, %v497, 0
          %v534 = vsel %vm511, %v498, 0
          %536 = vmatprep.subr.bf16.mxu0 0
          %537 = vmatpush1.bf16.msra.mxu0 %v507
          %538 = vmatprep.subr.bf16.mxu0 0
          %539 = vmatpush1.bf16.msra.mxu0 %v508
          %540 = vmatprep.subr.bf16.mxu0 0
          %541 = vmatpush1.bf16.msra.mxu0 0
          %542 = vmatprep.subr.bf16.mxu0 0
          %543 = vmatpush1.bf16.msra.mxu0 0
          %544 = vmatprep.subr.bf16.mxu0 0
          %545 = vmatpush1.bf16.msra.mxu0 0
          %546 = vmatprep.subr.bf16.mxu0 0
          %547 = vmatpush1.bf16.msra.mxu0 0
          %548 = vmatprep.subr.bf16.mxu0 0
          %549 = vmatpush1.bf16.msra.mxu0 0
          %550 = vmatprep.subr.bf16.mxu0 0
          %551 = vmatpush1.bf16.msra.mxu0 0
          %552 = vmatprep.subr.bf16.mxu0 0
          %553 = vmatpush1.bf16.msra.mxu0 0
          %554 = vmatprep.subr.bf16.mxu0 0
          %555 = vmatpush1.bf16.msra.mxu0 0
          %556 = vmatprep.subr.bf16.mxu0 0
          %557 = vmatpush1.bf16.msra.mxu0 0
          %558 = vmatprep.subr.bf16.mxu0 0
          %559 = vmatpush1.bf16.msra.mxu0 0
          %560 = vmatprep.subr.bf16.mxu0 0
          %561 = vmatpush1.bf16.msra.mxu0 0
          %562 = vmatprep.subr.bf16.mxu0 0
          %563 = vmatpush1.bf16.msra.mxu0 0
          %564 = vmatprep.subr.bf16.mxu0 0
          %565 = vmatpush1.bf16.msra.mxu0 0
          %566 = vmatprep.subr.bf16.mxu0 0
          %567 = vmatpush1.bf16.msra.mxu0 0
          %568 = vmatprep.mubr.bf16.mxu0 0
          %569 = vmatmul.mubr.bf16.gmra.mrb[0].mxu0 %v513
          %v570 = vpop.f32.mrb[0].mxu0
          %v571 = vadd.f32 %v457, %v570
          %v572 = vpop.f32.mrb[0].mxu0
          %v573 = vpop.f32.mrb[0].mxu0
          %v574 = vadd.f32 %v457, %v573
          %v575 = vpop.f32.mrb[0].mxu0
          %576 = vmatprep.mubr.bf16.mxu0 0
          %577 = vmatmul.mubr.bf16.gmra.mrb[0].mxu0 %v516
          %v578 = vpop.f32.mrb[0].mxu0
          %v579 = vadd.f32 %v457, %v578
          %v580 = vpop.f32.mrb[0].mxu0
          %v581 = vpop.f32.mrb[0].mxu0
          %v582 = vadd.f32 %v457, %v581
          %v583 = vpop.f32.mrb[0].mxu0
          %584 = vmatprep.mubr.bf16.mxu0 0
          %585 = vmatmul.mubr.bf16.gmra.mrb[0].mxu0 %v519
          %v586 = vpop.f32.mrb[0].mxu0
          %v587 = vadd.f32 %v457, %v586
          %v588 = vpop.f32.mrb[0].mxu0
          %v589 = vpop.f32.mrb[0].mxu0
          %v590 = vadd.f32 %v457, %v589
          %v591 = vpop.f32.mrb[0].mxu0
          %592 = vmatprep.mubr.bf16.mxu0 0
          %593 = vmatmul.mubr.bf16.gmra.mrb[0].mxu0 %v522
          %v594 = vpop.f32.mrb[0].mxu0
          %v595 = vadd.f32 %v457, %v594
          %v596 = vpop.f32.mrb[0].mxu0
          %v597 = vpop.f32.mrb[0].mxu0
          %v598 = vadd.f32 %v457, %v597
          %v599 = vpop.f32.mrb[0].mxu0
          %600 = vmatprep.mubr.bf16.mxu0 0
          %601 = vmatmul.mubr.bf16.gmra.mrb[0].mxu0 %v525
          %v602 = vpop.f32.mrb[0].mxu0
          %v603 = vadd.f32 %v457, %v602
          %v604 = vpop.f32.mrb[0].mxu0
          %v605 = vpop.f32.mrb[0].mxu0
          %v606 = vadd.f32 %v457, %v605
          %v607 = vpop.f32.mrb[0].mxu0
          %608 = vmatprep.mubr.bf16.mxu0 0
          %609 = vmatmul.mubr.bf16.gmra.mrb[0].mxu0 %v528
          %v610 = vpop.f32.mrb[0].mxu0
          %v611 = vadd.f32 %v457, %v610
          %v612 = vpop.f32.mrb[0].mxu0
          %v613 = vpop.f32.mrb[0].mxu0
          %v614 = vadd.f32 %v457, %v613
          %v615 = vpop.f32.mrb[0].mxu0
          %616 = vmatprep.mubr.bf16.mxu0 0
          %617 = vmatmul.mubr.bf16.gmra.mrb[0].mxu0 %v531
          %v618 = vpop.f32.mrb[0].mxu0
          %v619 = vadd.f32 %v457, %v618
          %v620 = vpop.f32.mrb[0].mxu0
          %v621 = vpop.f32.mrb[0].mxu0
          %v622 = vadd.f32 %v457, %v621
          %v623 = vpop.f32.mrb[0].mxu0
          %624 = vmatprep.mubr.bf16.mxu0 0
          %625 = vmatmul.mubr.bf16.gmra.mrb[0].mxu0 %v534
          %v626 = vpop.f32.mrb[0].mxu0
          %v627 = vadd.f32 %v457, %v626
          %v628 = vpop.f32.mrb[0].mxu0
          %v629 = vpop.f32.mrb[0].mxu0
          %v630 = vadd.f32 %v457, %v629
          %v631 = vpop.f32.mrb[0].mxu0
          %632 = vdwg.mxu0
          %v633 = vpack.c.bf16 %v574, %v571
          %v634 = vpack.c.bf16 %v582, %v579
          %v635 = vpack.c.bf16 %v590, %v587
          %v636 = vpack.c.bf16 %v598, %v595
          %v637 = vpack.c.bf16 %v606, %v603
          %v638 = vpack.c.bf16 %v614, %v611
          %v639 = vpack.c.bf16 %v622, %v619
          %v640 = vpack.c.bf16 %v630, %v627
          %vm641 = vcmask 523264
          %642 = vst.msk [vmem:[#allocation2] sm:$0xff] %vm641, %v633
          %643 = vst.msk [vmem:[#allocation2 + $0x8] sm:$0xff] %vm641, %v634
          %644 = vst.msk [vmem:[#allocation2 + $0x10] sm:$0xff] %vm641, %v635
          %645 = vst.msk [vmem:[#allocation2 + $0x18] sm:$0xff] %vm641, %v636
          %646 = vst.msk [vmem:[#allocation2 + $0x20] sm:$0xff] %vm641, %v637
          %647 = vst.msk [vmem:[#allocation2 + $0x28] sm:$0xff] %vm641, %v638
          %648 = vst.msk [vmem:[#allocation2 + $0x30] sm:$0xff] %vm641, %v639
          %649 = vst.msk [vmem:[#allocation2 + $0x38] sm:$0xff] %vm641, %v640
        $region60: #{tpu_custom_call.1} parent=55 // pred_fallthru
          _
        %v650 = vld [vmem:[%s418] sm:$0xf]
        %v651 = vld [vmem:[%s426] sm:$0x1]
        %v652 = vld [vmem:[%s3] sm:$0xf]
        %v653 = vld [vmem:[%s3 + $0x4] sm:$0xf]
        %v654 = vld [vmem:[%s3 + $0x8] sm:$0xf]
        %v655 = vld [vmem:[%s3 + $0xc] sm:$0xf]
        %v656 = vld [vmem:[%s4] sm:$0x1]
        %v658 = vlaneseq
        %v659 = vshrl.u32 %v658, 7
        %v660 = vsub.s32 0, %v659
        %v661 = vrot.slane %v656, %v660
        %v667 = vunpack.c.l.b16 %v652
        %v668 = vunpack.c.l.b16 %v653
        %v669 = vunpack.c.l.b16 %v654
        %v670 = vunpack.c.l.b16 %v655
        %v671 = vpack.c.b16 %v668, %v667
        %v672 = vpack.c.b16 %v670, %v669
        %vm675 = vcmask 261120
        %v677 = vsel %vm675, %v650, 0
        %679 = vmatprep.subr.bf16.mxu0 0
        %680 = vmatpush1.bf16.msra.mxu0 %v671
        %681 = vmatprep.subr.bf16.mxu0 0
        %682 = vmatpush1.bf16.msra.mxu0 %v672
        %683 = vmatprep.subr.bf16.mxu0 0
        %684 = vmatpush1.bf16.msra.mxu0 0
        %685 = vmatprep.subr.bf16.mxu0 0
        %686 = vmatpush1.bf16.msra.mxu0 0
        %687 = vmatprep.subr.bf16.mxu0 0
        %688 = vmatpush1.bf16.msra.mxu0 0
        %689 = vmatprep.subr.bf16.mxu0 0
        %690 = vmatpush1.bf16.msra.mxu0 0
        %691 = vmatprep.subr.bf16.mxu0 0
        %692 = vmatpush1.bf16.msra.mxu0 0
        %693 = vmatprep.subr.bf16.mxu0 0
        %694 = vmatpush1.bf16.msra.mxu0 0
        %695 = vmatprep.subr.bf16.mxu0 0
        %696 = vmatpush1.bf16.msra.mxu0 0
        %697 = vmatprep.subr.bf16.mxu0 0
        %698 = vmatpush1.bf16.msra.mxu0 0
        %699 = vmatprep.subr.bf16.mxu0 0
        %700 = vmatpush1.bf16.msra.mxu0 0
        %701 = vmatprep.subr.bf16.mxu0 0
        %702 = vmatpush1.bf16.msra.mxu0 0
        %703 = vmatprep.subr.bf16.mxu0 0
        %704 = vmatpush1.bf16.msra.mxu0 0
        %705 = vmatprep.subr.bf16.mxu0 0
        %706 = vmatpush1.bf16.msra.mxu0 0
        %707 = vmatprep.subr.bf16.mxu0 0
        %708 = vmatpush1.bf16.msra.mxu0 0
        %709 = vmatprep.subr.bf16.mxu0 0
        %710 = vmatpush1.bf16.msra.mxu0 0
        %711 = vmatprep.mubr.bf16.mxu0 0
        %712 = vmatmul.mubr.bf16.gmra.mrb[0].mxu0 %v677
        %v713 = vpop.f32.mrb[0].mxu0
        %v714 = vadd.f32 %v661, %v713
        %v715 = vpop.f32.mrb[0].mxu0
        %v716 = vpop.f32.mrb[0].mxu0
        %v717 = vpop.f32.mrb[0].mxu0
        %718 = vdwg.mxu0
        %v719 = vpack.c.bf16 %v714, %v714
        %v720 = vld [vmem:[#allocation2] sm:$0xff]
        %v721 = vld [vmem:[#allocation2 + $0x8] sm:$0xff]
        %v722 = vld [vmem:[#allocation2 + $0x10] sm:$0xff]
        %v723 = vld [vmem:[#allocation2 + $0x18] sm:$0xff]
        %v724 = vld [vmem:[#allocation2 + $0x20] sm:$0xff]
        %v725 = vld [vmem:[#allocation2 + $0x28] sm:$0xff]
        %v726 = vld [vmem:[#allocation2 + $0x30] sm:$0xff]
        %v727 = vld [vmem:[#allocation2 + $0x38] sm:$0xff]
        %v729 = vlaneseq
        %v730 = vshrl.u32 %v729, 7
        %v731 = vsub.s32 0, %v730
        %v732 = vrot.slane %v651, %v731
        %vm734 = vcmask 130048
        %v736 = vsel %vm734, %v719, 0
        %v739 = vsel %vm734, %v720, 0
        %v742 = vsel %vm734, %v721, 0
        %v745 = vsel %vm734, %v722, 0
        %v748 = vsel %vm734, %v723, 0
        %v751 = vsel %vm734, %v724, 0
        %v754 = vsel %vm734, %v725, 0
        %v757 = vsel %vm734, %v726, 0
        %v760 = vsel %vm734, %v727, 0
        %762 = vmatprep.subr.bf16.mxu0 0
        %763 = vmatpush1.bf16.xpose.msra.mxu0 %v739
        %764 = vmatprep.subr.bf16.mxu0 0
        %765 = vmatpush1.bf16.xpose.msra.mxu0 %v742
        %766 = vmatprep.subr.bf16.mxu0 0
        %767 = vmatpush1.bf16.xpose.msra.mxu0 %v745
        %768 = vmatprep.subr.bf16.mxu0 0
        %769 = vmatpush1.bf16.xpose.msra.mxu0 %v748
        %770 = vmatprep.subr.bf16.mxu0 0
        %771 = vmatpush1.bf16.xpose.msra.mxu0 %v751
        %772 = vmatprep.subr.bf16.mxu0 0
        %773 = vmatpush1.bf16.xpose.msra.mxu0 %v754
        %774 = vmatprep.subr.bf16.mxu0 0
        %775 = vmatpush1.bf16.xpose.msra.mxu0 %v757
        %776 = vmatprep.subr.bf16.mxu0 0
        %777 = vmatpush1.bf16.xpose.msra.mxu0 %v760
        %778 = vmatprep.subr.bf16.mxu0 0
        %779 = vmatpush1.bf16.xpose.msra.mxu0 0
        %780 = vmatprep.subr.bf16.mxu0 0
        %781 = vmatpush1.bf16.xpose.msra.mxu0 0
        %782 = vmatprep.subr.bf16.mxu0 0
        %783 = vmatpush1.bf16.xpose.msra.mxu0 0
        %784 = vmatprep.subr.bf16.mxu0 0
        %785 = vmatpush1.bf16.xpose.msra.mxu0 0
        %786 = vmatprep.subr.bf16.mxu0 0
        %787 = vmatpush1.bf16.xpose.msra.mxu0 0
        %788 = vmatprep.subr.bf16.mxu0 0
        %789 = vmatpush1.bf16.xpose.msra.mxu0 0
        %790 = vmatprep.subr.bf16.mxu0 0
        %791 = vmatpush1.bf16.xpose.msra.mxu0 0
        %792 = vmatprep.subr.bf16.mxu0 0
        %793 = vmatpush1.bf16.xpose.msra.mxu0 0
        %794 = vmatprep.mubr.bf16.mxu0 0
        %795 = vmatmul.mubr.bf16.gmra.mrb[0].mxu0 %v736
        %v796 = vpop.f32.mrb[0].mxu0
        %v797 = vadd.f32 %v732, %v796
        %v798 = vpop.f32.mrb[0].mxu0
        %v799 = vpop.f32.mrb[0].mxu0
        %v800 = vpop.f32.mrb[0].mxu0
        %801 = vdwg.mxu0
        %802 = vmax.xlane.f32.xlu0 %v797
        %v803 = vpop.xlane.xlu0 %802
        %v804 = vsub.f32 %v797, %v803
        %v805 = vmul.f32 %v804, 1.442695
        %v806 = vpow.pop %v805
        %807 = vadd.xlane.f32.xlu0 %v806
        %v808 = vpop.xlane.xlu0 %807
        %v809 = vrcp.pop %v808
        %v810 = vmul.f32 %v806, %v809
        %v811 = vpack.c.bf16 %v810, %v810
        %820 = vrot.lane.b32.xlu0 %v720, 96
        %v821 = vpop.permute.xlu0 %820
        %822 = vrot.lane.b32.xlu0 %v721, 96
        %v823 = vpop.permute.xlu0 %822
        %824 = vrot.lane.b32.xlu0 %v722, 96
        %v825 = vpop.permute.xlu0 %824
        %826 = vrot.lane.b32.xlu0 %v723, 96
        %v827 = vpop.permute.xlu0 %826
        %828 = vrot.lane.b32.xlu0 %v724, 96
        %v829 = vpop.permute.xlu0 %828
        %830 = vrot.lane.b32.xlu0 %v725, 96
        %v831 = vpop.permute.xlu0 %830
        %832 = vrot.lane.b32.xlu0 %v726, 96
        %v833 = vpop.permute.xlu0 %832
        %834 = vrot.lane.b32.xlu0 %v727, 96
        %v835 = vpop.permute.xlu0 %834
        %844 = vmatprep.subr.bf16.mxu0 0
        %845 = vmatpush1.bf16.msra.mxu0 %v821
        %846 = vmatprep.subr.bf16.mxu0 0
        %847 = vmatpush1.bf16.msra.mxu0 %v823
        %848 = vmatprep.subr.bf16.mxu0 0
        %849 = vmatpush1.bf16.msra.mxu0 %v825
        %850 = vmatprep.subr.bf16.mxu0 0
        %851 = vmatpush1.bf16.msra.mxu0 %v827
        %852 = vmatprep.subr.bf16.mxu0 0
        %853 = vmatpush1.bf16.msra.mxu0 %v829
        %854 = vmatprep.subr.bf16.mxu0 0
        %855 = vmatpush1.bf16.msra.mxu0 %v831
        %856 = vmatprep.subr.bf16.mxu0 0
        %857 = vmatpush1.bf16.msra.mxu0 %v833
        %858 = vmatprep.subr.bf16.mxu0 0
        %859 = vmatpush1.bf16.msra.mxu0 %v835
        %860 = vmatprep.subr.bf16.mxu0 0
        %861 = vmatpush1.bf16.msra.mxu0 0
        %862 = vmatprep.subr.bf16.mxu0 0
        %863 = vmatpush1.bf16.msra.mxu0 0
        %864 = vmatprep.subr.bf16.mxu0 0
        %865 = vmatpush1.bf16.msra.mxu0 0
        %866 = vmatprep.subr.bf16.mxu0 0
        %867 = vmatpush1.bf16.msra.mxu0 0
        %868 = vmatprep.subr.bf16.mxu0 0
        %869 = vmatpush1.bf16.msra.mxu0 0
        %870 = vmatprep.subr.bf16.mxu0 0
        %871 = vmatpush1.bf16.msra.mxu0 0
        %872 = vmatprep.subr.bf16.mxu0 0
        %873 = vmatpush1.bf16.msra.mxu0 0
        %874 = vmatprep.subr.bf16.mxu0 0
        %875 = vmatpush1.bf16.msra.mxu0 0
        %876 = vmatprep.mubr.bf16.mxu0 0
        %877 = vmatmul.mubr.bf16.gmra.mrb[0].mxu0 %v811
        %v878 = vpop.f32.mrb[0].mxu0
        %v879 = vadd.f32 0.0, %v878
        %v880 = vpop.f32.mrb[0].mxu0
        %v881 = vpop.f32.mrb[0].mxu0
        %v882 = vpop.f32.mrb[0].mxu0
        %883 = vdwg.mxu0
        %v884 = vpack.c.bf16 %v879, %v879
        %vm885 = vcmask 125952
        %886 = vst.msk [vmem:[#allocation3] sm:$0xf] %vm885, %v884
        %v887 = vadd.f32 %v810, 0.0
        %v888 = vld [vmem:[#allocation2] sm:$0xff]
        %v889 = vld [vmem:[#allocation2 + $0x8] sm:$0xff]
        %v890 = vld [vmem:[#allocation2 + $0x10] sm:$0xff]
        %v891 = vld [vmem:[#allocation2 + $0x18] sm:$0xff]
        %v892 = vld [vmem:[#allocation2 + $0x20] sm:$0xff]
        %v893 = vld [vmem:[#allocation2 + $0x28] sm:$0xff]
        %v894 = vld [vmem:[#allocation2 + $0x30] sm:$0xff]
        %v895 = vld [vmem:[#allocation2 + $0x38] sm:$0xff]
        %897 = vrot.lane.b32.xlu0 %v719, 112
        %v898 = vpop.permute.xlu0 %897
        %907 = vrot.lane.b32.xlu0 %v888, 112
        %v908 = vpop.permute.xlu0 %907
        %909 = vrot.lane.b32.xlu0 %v889, 112
        %v910 = vpop.permute.xlu0 %909
        %911 = vrot.lane.b32.xlu0 %v890, 112
        %v912 = vpop.permute.xlu0 %911
        %913 = vrot.lane.b32.xlu0 %v891, 112
        %v914 = vpop.permute.xlu0 %913
        %915 = vrot.lane.b32.xlu0 %v892, 112
        %v916 = vpop.permute.xlu0 %915
        %917 = vrot.lane.b32.xlu0 %v893, 112
        %v918 = vpop.permute.xlu0 %917
        %919 = vrot.lane.b32.xlu0 %v894, 112
        %v920 = vpop.permute.xlu0 %919
        %921 = vrot.lane.b32.xlu0 %v895, 112
        %v922 = vpop.permute.xlu0 %921
        %v924 = vsel %vm734, %v898, 0
        %v927 = vsel %vm734, %v908, 0
        %v930 = vsel %vm734, %v910, 0
        %v933 = vsel %vm734, %v912, 0
        %v936 = vsel %vm734, %v914, 0
        %v939 = vsel %vm734, %v916, 0
        %v942 = vsel %vm734, %v918, 0
        %v945 = vsel %vm734, %v920, 0
        %v948 = vsel %vm734, %v922, 0
        %950 = vmatprep.subr.bf16.mxu0 0
        %951 = vmatpush1.bf16.xpose.msra.mxu0 %v927
        %952 = vmatprep.subr.bf16.mxu0 0
        %953 = vmatpush1.bf16.xpose.msra.mxu0 %v930
        %954 = vmatprep.subr.bf16.mxu0 0
        %955 = vmatpush1.bf16.xpose.msra.mxu0 %v933
        %956 = vmatprep.subr.bf16.mxu0 0
        %957 = vmatpush1.bf16.xpose.msra.mxu0 %v936
        %958 = vmatprep.subr.bf16.mxu0 0
        %959 = vmatpush1.bf16.xpose.msra.mxu0 %v939
        %960 = vmatprep.subr.bf16.mxu0 0
        %961 = vmatpush1.bf16.xpose.msra.mxu0 %v942
        %962 = vmatprep.subr.bf16.mxu0 0
        %963 = vmatpush1.bf16.xpose.msra.mxu0 %v945
        %964 = vmatprep.subr.bf16.mxu0 0
        %965 = vmatpush1.bf16.xpose.msra.mxu0 %v948
        %966 = vmatprep.subr.bf16.mxu0 0
        %967 = vmatpush1.bf16.xpose.msra.mxu0 0
        %968 = vmatprep.subr.bf16.mxu0 0
        %969 = vmatpush1.bf16.xpose.msra.mxu0 0
        %970 = vmatprep.subr.bf16.mxu0 0
        %971 = vmatpush1.bf16.xpose.msra.mxu0 0
        %972 = vmatprep.subr.bf16.mxu0 0
        %973 = vmatpush1.bf16.xpose.msra.mxu0 0
        %974 = vmatprep.subr.bf16.mxu0 0
        %975 = vmatpush1.bf16.xpose.msra.mxu0 0
        %976 = vmatprep.subr.bf16.mxu0 0
        %977 = vmatpush1.bf16.xpose.msra.mxu0 0
        %978 = vmatprep.subr.bf16.mxu0 0
        %979 = vmatpush1.bf16.xpose.msra.mxu0 0
        %980 = vmatprep.subr.bf16.mxu0 0
        %981 = vmatpush1.bf16.xpose.msra.mxu0 0
        %982 = vmatprep.mubr.bf16.mxu0 0
        %983 = vmatmul.mubr.bf16.gmra.mrb[0].mxu0 %v924
        %v984 = vpop.f32.mrb[0].mxu0
        %v985 = vadd.f32 %v732, %v984
        %v986 = vpop.f32.mrb[0].mxu0
        %v987 = vpop.f32.mrb[0].mxu0
        %v988 = vpop.f32.mrb[0].mxu0
        %989 = vdwg.mxu0
        %990 = vmax.xlane.f32.xlu0 %v985
        %v991 = vpop.xlane.xlu0 %990
        %v992 = vsub.f32 %v985, %v991
        %v993 = vmul.f32 %v992, 1.442695
        %v994 = vpow.pop %v993
        %995 = vadd.xlane.f32.xlu0 %v994
        %v996 = vpop.xlane.xlu0 %995
        %v997 = vrcp.pop %v996
        %v998 = vmul.f32 %v994, %v997
        %v999 = vpack.c.bf16 %v998, %v998
        %1000 = vrot.lane.b32.xlu0 %v888, 80
        %v1001 = vpop.permute.xlu0 %1000
        %1002 = vrot.lane.b32.xlu0 %v889, 80
        %v1003 = vpop.permute.xlu0 %1002
        %1004 = vrot.lane.b32.xlu0 %v890, 80
        %v1005 = vpop.permute.xlu0 %1004
        %1006 = vrot.lane.b32.xlu0 %v891, 80
        %v1007 = vpop.permute.xlu0 %1006
        %1008 = vrot.lane.b32.xlu0 %v892, 80
        %v1009 = vpop.permute.xlu0 %1008
        %1010 = vrot.lane.b32.xlu0 %v893, 80
        %v1011 = vpop.permute.xlu0 %1010
        %1012 = vrot.lane.b32.xlu0 %v894, 80
        %v1013 = vpop.permute.xlu0 %1012
        %1014 = vrot.lane.b32.xlu0 %v895, 80
        %v1015 = vpop.permute.xlu0 %1014
        %1024 = vmatprep.subr.bf16.mxu0 0
        %1025 = vmatpush1.bf16.msra.mxu0 %v1001
        %1026 = vmatprep.subr.bf16.mxu0 0
        %1027 = vmatpush1.bf16.msra.mxu0 %v1003
        %1028 = vmatprep.subr.bf16.mxu0 0
        %1029 = vmatpush1.bf16.msra.mxu0 %v1005
        %1030 = vmatprep.subr.bf16.mxu0 0
        %1031 = vmatpush1.bf16.msra.mxu0 %v1007
        %1032 = vmatprep.subr.bf16.mxu0 0
        %1033 = vmatpush1.bf16.msra.mxu0 %v1009
        %1034 = vmatprep.subr.bf16.mxu0 0
        %1035 = vmatpush1.bf16.msra.mxu0 %v1011
        %1036 = vmatprep.subr.bf16.mxu0 0
        %1037 = vmatpush1.bf16.msra.mxu0 %v1013
        %1038 = vmatprep.subr.bf16.mxu0 0
        %1039 = vmatpush1.bf16.msra.mxu0 %v1015
        %1040 = vmatprep.subr.bf16.mxu0 0
        %1041 = vmatpush1.bf16.msra.mxu0 0
        %1042 = vmatprep.subr.bf16.mxu0 0
        %1043 = vmatpush1.bf16.msra.mxu0 0
        %1044 = vmatprep.subr.bf16.mxu0 0
        %1045 = vmatpush1.bf16.msra.mxu0 0
        %1046 = vmatprep.subr.bf16.mxu0 0
        %1047 = vmatpush1.bf16.msra.mxu0 0
        %1048 = vmatprep.subr.bf16.mxu0 0
        %1049 = vmatpush1.bf16.msra.mxu0 0
        %1050 = vmatprep.subr.bf16.mxu0 0
        %1051 = vmatpush1.bf16.msra.mxu0 0
        %1052 = vmatprep.subr.bf16.mxu0 0
        %1053 = vmatpush1.bf16.msra.mxu0 0
        %1054 = vmatprep.subr.bf16.mxu0 0
        %1055 = vmatpush1.bf16.msra.mxu0 0
        %1056 = vmatprep.mubr.bf16.mxu0 0
        %1057 = vmatmul.mubr.bf16.gmra.mrb[0].mxu0 %v999
        %v1058 = vpop.f32.mrb[0].mxu0
        %v1059 = vadd.f32 0.0, %v1058
        %v1060 = vpop.f32.mrb[0].mxu0
        %v1061 = vpop.f32.mrb[0].mxu0
        %v1062 = vpop.f32.mrb[0].mxu0
        %1063 = vdwg.mxu0
        %v1064 = vpack.c.bf16 %v1059, %v1059
        %v1066 = vunpack.c.l.b16 %v1064
        %v1067 = vpack.c.b16 %v1066, %v1066
        %1068 = vrot.lane.b32.xlu0 %v1067, 16
        %v1069 = vpop.permute.xlu0 %1068
        %vm1071 = vcmask 257152
        %1072 = vst.msk [vmem:[#allocation3] sm:$0xf] %vm1071, %v1069
        %v1073 = vadd.f32 %v887, %v998
        %v1074 = vld [vmem:[#allocation3] sm:$0xf]
        %v1075 = vld [vmem:[%s7] sm:$0xf]
        %v1076 = vld [vmem:[%s7 + $0x4] sm:$0xf]
        %v1077 = vld [vmem:[%s7 + $0x8] sm:$0xf]
        %v1078 = vld [vmem:[%s7 + $0xc] sm:$0xf]
        %v1079 = vld [vmem:[%s8] sm:$0x1]
        %v1081 = vlaneseq
        %v1082 = vshrl.u32 %v1081, 7
        %v1083 = vsub.s32 0, %v1082
        %v1084 = vrot.slane %v1079, %v1083
        %v1090 = vunpack.c.l.b16 %v1075
        %v1091 = vunpack.c.l.b16 %v1076
        %v1092 = vunpack.c.l.b16 %v1077
        %v1093 = vunpack.c.l.b16 %v1078
        %v1094 = vpack.c.b16 %v1091, %v1090
        %v1095 = vpack.c.b16 %v1093, %v1092
        %v1099 = vsel %vm675, %v1074, 0
        %1101 = vmatprep.subr.bf16.mxu0 0
        %1102 = vmatpush1.bf16.msra.mxu0 %v1094
        %1103 = vmatprep.subr.bf16.mxu0 0
        %1104 = vmatpush1.bf16.msra.mxu0 %v1095
        %1105 = vmatprep.subr.bf16.mxu0 0
        %1106 = vmatpush1.bf16.msra.mxu0 0
        %1107 = vmatprep.subr.bf16.mxu0 0
        %1108 = vmatpush1.bf16.msra.mxu0 0
        %1109 = vmatprep.subr.bf16.mxu0 0
        %1110 = vmatpush1.bf16.msra.mxu0 0
        %1111 = vmatprep.subr.bf16.mxu0 0
        %1112 = vmatpush1.bf16.msra.mxu0 0
        %1113 = vmatprep.subr.bf16.mxu0 0
        %1114 = vmatpush1.bf16.msra.mxu0 0
        %1115 = vmatprep.subr.bf16.mxu0 0
        %1116 = vmatpush1.bf16.msra.mxu0 0
        %1117 = vmatprep.subr.bf16.mxu0 0
        %1118 = vmatpush1.bf16.msra.mxu0 0
        %1119 = vmatprep.subr.bf16.mxu0 0
        %1120 = vmatpush1.bf16.msra.mxu0 0
        %1121 = vmatprep.subr.bf16.mxu0 0
        %1122 = vmatpush1.bf16.msra.mxu0 0
        %1123 = vmatprep.subr.bf16.mxu0 0
        %1124 = vmatpush1.bf16.msra.mxu0 0
        %1125 = vmatprep.subr.bf16.mxu0 0
        %1126 = vmatpush1.bf16.msra.mxu0 0
        %1127 = vmatprep.subr.bf16.mxu0 0
        %1128 = vmatpush1.bf16.msra.mxu0 0
        %1129 = vmatprep.subr.bf16.mxu0 0
        %1130 = vmatpush1.bf16.msra.mxu0 0
        %1131 = vmatprep.subr.bf16.mxu0 0
        %1132 = vmatpush1.bf16.msra.mxu0 0
        %1133 = vmatprep.mubr.bf16.mxu0 0
        %1134 = vmatmul.mubr.bf16.gmra.mrb[0].mxu0 %v1099
        %v1135 = vpop.f32.mrb[0].mxu0
        %v1136 = vadd.f32 %v1084, %v1135
        %v1137 = vpop.f32.mrb[0].mxu0
        %v1138 = vpop.f32.mrb[0].mxu0
        %v1139 = vpop.f32.mrb[0].mxu0
        %1140 = vdwg.mxu0
        %1141 = vst.msk [vmem:[%s404] sm:$0xff] %vm675, %v1136
        %v1142 = vmul.f32 %v1073, 0.5
        %1143 = vst [vmem:[%s411] sm:$0xff] %v1142
        %s1144 = sand.u32 %s256, 1
        %s1145 = scalar_lea.sflag [#allocation5], %s1144
        %s1146 = sand.u32 %s256, 1
        %s1147 = smul.addr %s1146, 8
        %s1148 = scalar_lea.vmem [#allocation4], %s1147
        %s1149 = sand.u32 %s284, 1
        %s1150 = scalar_lea.sflag [#allocation7], %s1149
        %s1151 = sand.u32 %s284, 1
        %s1152 = smul.addr %s1151, 8
        %s1153 = scalar_lea.vmem [#allocation6], %s1152
        // Predicated region
        $region61: #{tpu_custom_call.1} parent=55 // pred_check
          %p1154 = pneg %p266
        $region62: #{tpu_custom_call.1} parent=55 // pred_check_branch
          %1156 = sbr.rel (%p1154) target = $region64
        $region63: #{tpu_custom_call.1} parent=55 // pred_region
          %s1158 = ssub.s32 128, 128
          %1159 = vsyncadd %s1145, %s1158
          %s1160 = sadd.s32 %s33, %s32
          %s1161 = smul.addr %s1160, 128
          %s1162 = scalar_lea.hbm %s9, %s1161
          %s1164 = sshll.u32 %s1148, 4
          %s1165 = int_to_ptr.vmem [resolvable:$true] %s1164
          %1167 = dma.vmem_to_hbm [thread:$0]  %s1165, 128, %s1162, %s1145
        $region64: #{tpu_custom_call.1} parent=55 // pred_fallthru
          _
        // Predicated region
        $region65: #{tpu_custom_call.1} parent=55 // pred_check
          %p1168 = pneg %p294
        $region66: #{tpu_custom_call.1} parent=55 // pred_check_branch
          %1170 = sbr.rel (%p1168) target = $region68
        $region67: #{tpu_custom_call.1} parent=55 // pred_region
          %s1172 = ssub.s32 128, 128
          %1173 = vsyncadd %s1150, %s1172
          %s1174 = sadd.s32 %s33, %s32
          %s1175 = smul.addr %s1174, 128
          %s1176 = scalar_lea.hbm %s10, %s1175
          %s1178 = sshll.u32 %s1153, 4
          %s1179 = int_to_ptr.vmem [resolvable:$true] %s1178
          %1181 = dma.vmem_to_hbm [thread:$0]  %s1179, 128, %s1176, %s1150
        $region68: #{tpu_custom_call.1} parent=55 // pred_fallthru
          _
      $region56: #{tpu_custom_call.1} parent=5 // pred_fallthru
        _
      %p1182 = scmp.le.s32.totalorder 2, %s23
      // Predicated region
      $region69: #{tpu_custom_call.1} parent=5 // pred_check
        %p1183 = pneg %p1182
      $region70: #{tpu_custom_call.1} parent=5 // pred_check_branch
        %1185 = sbr.rel (%p1183) target = $region72
      $region71: #{tpu_custom_call.1} parent=5 // pred_region
        %s1186 = ssub.s32 %s23, 2
        // Predicated region
        $region73: #{tpu_custom_call.1} parent=71 // pred_check
          %p1187 = pneg %p272
        $region74: #{tpu_custom_call.1} parent=71 // pred_check_branch
          %1189 = sbr.rel (%p1187) target = $region76
        $region75: #{tpu_custom_call.1} parent=71 // pred_region
          %s1190 = sand.u32 %s257, 1
          %s1191 = scalar_lea.sflag [#allocation5], %s1190
          %s1192 = sand.u32 %s257, 1
          %s1193 = smul.addr %s1192, 8
          %s1194 = scalar_lea.vmem [#allocation4], %s1193
          %1195 = dma.done %s1191, 128
        $region76: #{tpu_custom_call.1} parent=71 // pred_fallthru
          _
        // Predicated region
        $region77: #{tpu_custom_call.1} parent=71 // pred_check
          %p1196 = pneg %p300
        $region78: #{tpu_custom_call.1} parent=71 // pred_check_branch
          %1198 = sbr.rel (%p1196) target = $region80
        $region79: #{tpu_custom_call.1} parent=71 // pred_region
          %s1199 = sand.u32 %s285, 1
          %s1200 = scalar_lea.sflag [#allocation7], %s1199
          %s1201 = sand.u32 %s285, 1
          %s1202 = smul.addr %s1201, 8
          %s1203 = scalar_lea.vmem [#allocation6], %s1202
          %1204 = dma.done %s1200, 128
        $region80: #{tpu_custom_call.1} parent=71 // pred_fallthru
          _
      $region72: #{tpu_custom_call.1} parent=5 // pred_fallthru
        _
    $region6: #{tpu_custom_call.1} parent=1 // loop_footer
      %s27 = sadd.s32 1, %s23
    $region7: #{tpu_custom_call.1} parent=1 // loop_footer_branch
      %22 = sbr.rel target = $region3
    $region8: #{tpu_custom_call.1} parent=1 // loop_exit
      _
    %1205 = vsyncpa [#allocation5], 1
    %s1206 = scalar_lea.sflag [#allocation5], 1
    %1207 = vsyncpa %s1206, 1
    %1208 = vsyncpa [#allocation7], 1
    %s1209 = scalar_lea.sflag [#allocation7], 1
    %1210 = vsyncpa %s1209, 1

</llo_original>
